<compile_context>
chip_gen: v6e
topology: v6e:2x2x1
jax: 0.10.0
libtpu: 0.0.40
codegen_flags: <defaults>
</compile_context>

<pallas_src>
import math

import jax
import jax.numpy as jnp
from jax.experimental import pallas as pl
from jax.experimental.pallas import tpu as pltpu

# ---- BERT-style config (small, consistent with the module) ------------------
BATCH = 2
SEQ = 8
HIDDEN = 32
NUM_HEADS = 4
HEAD_DIM = HIDDEN // NUM_HEADS
LAYER_NORM_EPS = 1e-12


def bert_attention_kernel(x_ref, mask_ref, wqkv_ref, bqkv_ref, wo_ref, op_ref,
                          out_ref):
    """Whole-batch BertAttention forward in a single grid step.

    x_ref    : [B*S, H]   hidden_states, rows are (batch, seq) row-major
    mask_ref : [B, 1, S]  additive attention mask (0 / -10000)
    wqkv_ref : [H, 3H]    fused {query|key|value} weights, [in, out] layout;
                          query block pre-scaled by 1/sqrt(head_dim)
    bqkv_ref : [1, 3H]    fused biases (query part pre-scaled)
    wo_ref   : [H, H]     output.dense weight, unsplit, [in, out] layout
    op_ref   : [3, H]     row 0 = output.dense bias, 1 = LN gamma, 2 = LN beta
    out_ref  : [B*S, H]   attention_output
    """
    B, S, H, NH, DH = BATCH, SEQ, HIDDEN, NUM_HEADS, HEAD_DIM
    BS = B * S

    x = x_ref[...].astype(jnp.float32)                           # [BS, H]

    # --- fused Q/K/V projection: ONE MXU matmul, 96-wide RHS ---
    qkv = jnp.dot(x, wqkv_ref[...],
                  preferred_element_type=jnp.float32) + bqkv_ref[...]   # [BS, 3H]

    # --- gather per-head operands into ONE batched layout [NH*B, S, DH]
    #     (head-major blocks along the leading axis).  The DH-wide lane
    #     slices remain (removing them needs an S<->NH sublane/lane
    #     relayout), but they are mutually independent and feed a single
    #     batched einsum pair instead of 8 dependent MXU pushes. ---
    def gather_heads(col_off):
        parts = [
            qkv[:, col_off + h * DH: col_off + (h + 1) * DH].reshape(B, S, DH)
            for h in range(NH)
        ]
        return jnp.concatenate(parts, axis=0)                    # [NH*B, S, DH]

    q_h = gather_heads(0)        # query already carries 1/sqrt(DH) (in Wq/bq)
    k_h = gather_heads(H)
    v_h = gather_heads(2 * H)

    # --- additive mask: broadcast ONCE to the batched-head layout ---
    mask_b = jnp.broadcast_to(mask_ref[...], (B, S, S))          # [B, S, S]
    mask = jnp.broadcast_to(mask_b[None], (NH, B, S, S)).reshape(NH * B, S, S)

    # --- ONE batched einsum pair + ONE softmax chain for all heads/batches.
    #     'bqd,bkd->bqk' lets the MXU consume K in its stored layout (no
    #     explicit k.T). ---
    scores = jnp.einsum('bqd,bkd->bqk', q_h, k_h,
                        preferred_element_type=jnp.float32) + mask  # [NH*B, S, S]
    m = jnp.max(scores, axis=-1, keepdims=True)
    p = jnp.exp(scores - m)
    l = jnp.sum(p, axis=-1, keepdims=True)
    # approx reciprocal (EUP slot); ~1e-3 rel error — use exact divide if a
    # bit-matching HuggingFace reference is ever required.
    p = p * pl.reciprocal(l, approx=True)
    # TODO(synk): attention_probs dropout omitted (identity in eval mode).

    ctx = jnp.einsum('bqk,bkd->bqd', p, v_h,
                     preferred_element_type=jnp.float32)         # [NH*B, S, DH]

    # --- reassemble contexts head-major along lanes (NH*DH == H) and run ONE
    #     output-projection matmul with the unsplit Wo (no serial accumulate,
    #     no zeros init). ---
    ctx = ctx.reshape(NH, B, S, DH)
    ctx_cat = jnp.concatenate(
        [ctx[h].reshape(BS, DH) for h in range(NH)], axis=-1)    # [BS, H]
    attn_out = jnp.dot(ctx_cat, wo_ref[...],
                       preferred_element_type=jnp.float32)       # [BS, H]

    # --- BertSelfOutput: bias + (dropout = identity) + residual + LayerNorm ---
    bo = op_ref[0:1, :]
    gamma = op_ref[1:2, :]
    beta = op_ref[2:3, :]

    y = attn_out + bo + x
    mean = jnp.mean(y, axis=-1, keepdims=True)
    var = jnp.mean((y - mean) ** 2, axis=-1, keepdims=True)
    y_norm = (y - mean) * jax.lax.rsqrt(var + LAYER_NORM_EPS)
    out_ref[...] = (y_norm * gamma + beta).astype(out_ref.dtype)


def pack_params(params):
    """One-time parameter packing at model load (NOT inside the jitted forward).

    Folds the 1/sqrt(head_dim) attention scale into Wq/bq, fuses the Q/K/V
    projections into one [H, 3H] weight, and packs bias/LayerNorm rows.
    """
    wq, bq, wk, bk, wv, bv, wo, bo, gamma, beta = params
    scale = 1.0 / math.sqrt(HEAD_DIM)
    wqkv = jnp.concatenate([wq * scale, wk, wv], axis=1)         # [H, 3H]
    bqkv = jnp.concatenate([bq * scale, bk, bv], axis=1)         # [1, 3H]
    oparams = jnp.concatenate([bo, gamma, beta], axis=0)         # [3, H]
    return wqkv, bqkv, wo, oparams


@jax.jit
def bert_attention(hidden_states, attention_mask, wqkv, bqkv, wo, oparams):
    """hidden_states: [B,S,H] f32. attention_mask: [B,S] f32 additive mask.

    wqkv/bqkv/wo/oparams are the pre-packed parameters from pack_params().
    """
    B, S, H = hidden_states.shape
    x2 = hidden_states.reshape(B * S, H)
    mask3 = attention_mask.reshape(B, 1, S)

    vmem = pltpu.MemorySpace.VMEM
    out = pl.pallas_call(
        bert_attention_kernel,
        out_shape=jax.ShapeDtypeStruct((B * S, H), hidden_states.dtype),
        # Single grid step: the whole problem (< 32 KiB) lives in VMEM at
        # once; no per-step overhead, no double-buffering of constant weights.
        # At real BERT sizes replace with a row-tiled grid over B*S
        # (dimension_semantics=("parallel",), constant index_map for weights,
        # vmem_limit_bytes set) so v7x's 2 TCs are used and VMEM fits.
        in_specs=[pl.BlockSpec(memory_space=vmem)] * 6,
        out_specs=pl.BlockSpec(memory_space=vmem),
    )(x2, mask3, wqkv, bqkv, wo, oparams)
    # H=32 output rows are 32-lane partial stores; intentionally NOT padding H
    # to 128 (would 4x MXU/VPU work) — lane-dense automatically at H>=768.
    return out.reshape(B, S, H)


def reference_bert_attention(x, mask, params):
    """Pure-JAX reference mirroring BertSelfAttention + BertSelfOutput."""
    wq, bq, wk, bk, wv, bv, wo, bo, gamma, beta = params
    B, S, H = x.shape
    q = x @ wq + bq
    k = x @ wk + bk
    v = x @ wv + bv

    def split(t):
        return t.reshape(B, S, NUM_HEADS, HEAD_DIM).transpose(0, 2, 1, 3)

    qh, kh, vh = split(q), split(k), split(v)
    scores = jnp.einsum("bhqd,bhkd->bhqk", qh, kh) / math.sqrt(HEAD_DIM)
    scores = scores + mask[:, None, None, :]
    probs = jax.nn.softmax(scores, axis=-1)
    ctx = jnp.einsum("bhqk,bhkd->bhqd", probs, vh)
    ctx = ctx.transpose(0, 2, 1, 3).reshape(B, S, H)

    out = ctx @ wo + bo
    y = out + x
    mean = jnp.mean(y, axis=-1, keepdims=True)
    var = jnp.mean((y - mean) ** 2, axis=-1, keepdims=True)
    return (y - mean) * jax.lax.rsqrt(var + LAYER_NORM_EPS) * gamma + beta


def init_params(key):
    ks = jax.random.split(key, 5)
    std = 0.02
    # weights stored as [in, out] (PyTorch stores [out, in]; transposed here)
    wq = jax.random.normal(ks[0], (HIDDEN, HIDDEN), jnp.float32) * std
    wk = jax.random.normal(ks[1], (HIDDEN, HIDDEN), jnp.float32) * std
    wv = jax.random.normal(ks[2], (HIDDEN, HIDDEN), jnp.float32) * std
    wo = jax.random.normal(ks[3], (HIDDEN, HIDDEN), jnp.float32) * std
    bq = jnp.zeros((1, HIDDEN), jnp.float32)
    bk = jnp.full((1, HIDDEN), 0.01, jnp.float32)
    bv = jnp.full((1, HIDDEN), -0.01, jnp.float32)
    bo = jnp.zeros((1, HIDDEN), jnp.float32)
    gamma = jnp.ones((1, HIDDEN), jnp.float32)
    beta = jnp.zeros((1, HIDDEN), jnp.float32)
    return (wq, bq, wk, bk, wv, bv, wo, bo, gamma, beta)


if __name__ == "__main__":
    key = jax.random.PRNGKey(0)
    k_x, k_p = jax.random.split(key)

    hidden_states = jax.random.normal(k_x, (BATCH, SEQ, HIDDEN), jnp.float32)
    # all-ones attendance mask -> extended additive mask (0 everywhere),
    # same convention as BERT's (1 - mask) * -10000.0
    attn_bool = jnp.ones((BATCH, SEQ), jnp.float32)
    attention_mask = (1.0 - attn_bool) * -10000.0

    params = init_params(k_p)
    # one-time packing at "model load" — outside the jitted forward
    wqkv, bqkv, wo_packed, oparams = jax.block_until_ready(pack_params(params))

    out = bert_attention(hidden_states, attention_mask,
                         wqkv, bqkv, wo_packed, oparams)
    out = jax.block_until_ready(out)

    ref = reference_bert_attention(hidden_states, attention_mask, params)
    assert out.shape == (BATCH, SEQ, HIDDEN)
    assert jnp.allclose(out, ref, rtol=2e-2, atol=2e-2), "mismatch vs reference"

    print("KERNEL_OK")
</pallas_src>

<mosaic_0001>
module attributes {stable_mosaic.version = 11 : i64} {
  func.func @bert_attention_kernel(%arg0: memref<16x32xf32, #tpu.memory_space<vmem>>, %arg1: memref<2x1x8xf32, #tpu.memory_space<vmem>>, %arg2: memref<32x96xf32, #tpu.memory_space<vmem>>, %arg3: memref<1x96xf32, #tpu.memory_space<vmem>>, %arg4: memref<32x32xf32, #tpu.memory_space<vmem>>, %arg5: memref<3x32xf32, #tpu.memory_space<vmem>>, %arg6: memref<16x32xf32, #tpu.memory_space<vmem>>) attributes {dimension_semantics = [], scalar_prefetch = 0 : i64, scratch_operands = 0 : i64, tpu.core_type = #tpu.core_type<tc>} {
    %c0 = arith.constant 0 : index
    %c0_0 = arith.constant 0 : index
    %0 = vector.load %arg0[%c0, %c0_0] : memref<16x32xf32, #tpu.memory_space<vmem>>, vector<16x32xf32>
    %c0_1 = arith.constant 0 : index
    %c0_2 = arith.constant 0 : index
    %1 = vector.load %arg2[%c0_1, %c0_2] : memref<32x96xf32, #tpu.memory_space<vmem>>, vector<32x96xf32>
    %cst = arith.constant dense<0.000000e+00> : vector<16x96xf32>
    %2 = tpu.matmul %0, %1, %cst {dimension_numbers = #tpu.dot_dimension_numbers<[1], [0], [0], [1], [0, 0, 1, 1], [], []>} : vector<16x32xf32>, vector<32x96xf32>, vector<16x96xf32> -> vector<16x96xf32>
    %c0_3 = arith.constant 0 : index
    %c0_4 = arith.constant 0 : index
    %3 = vector.load %arg3[%c0_3, %c0_4] : memref<1x96xf32, #tpu.memory_space<vmem>>, vector<1x96xf32>
    %4 = vector.broadcast %3 : vector<1x96xf32> to vector<16x96xf32>
    %5 = arith.addf %2, %4 : vector<16x96xf32>
    %6 = vector.extract_strided_slice %5 {offsets = [0, 0], sizes = [16, 8], strides = [1, 1]} : vector<16x96xf32> to vector<16x8xf32>
    %7 = vector.shape_cast %6 : vector<16x8xf32> to vector<2x8x8xf32>
    %8 = vector.extract_strided_slice %5 {offsets = [0, 8], sizes = [16, 8], strides = [1, 1]} : vector<16x96xf32> to vector<16x8xf32>
    %9 = vector.shape_cast %8 : vector<16x8xf32> to vector<2x8x8xf32>
    %10 = vector.extract_strided_slice %5 {offsets = [0, 16], sizes = [16, 8], strides = [1, 1]} : vector<16x96xf32> to vector<16x8xf32>
    %11 = vector.shape_cast %10 : vector<16x8xf32> to vector<2x8x8xf32>
    %12 = vector.extract_strided_slice %5 {offsets = [0, 24], sizes = [16, 8], strides = [1, 1]} : vector<16x96xf32> to vector<16x8xf32>
    %13 = vector.shape_cast %12 : vector<16x8xf32> to vector<2x8x8xf32>
    %14 = tpu.concatenate %7, %9, %11, %13 in 0 : vector<2x8x8xf32>, vector<2x8x8xf32>, vector<2x8x8xf32>, vector<2x8x8xf32> -> vector<8x8x8xf32>
    %15 = vector.extract_strided_slice %5 {offsets = [0, 32], sizes = [16, 8], strides = [1, 1]} : vector<16x96xf32> to vector<16x8xf32>
    %16 = vector.shape_cast %15 : vector<16x8xf32> to vector<2x8x8xf32>
    %17 = vector.extract_strided_slice %5 {offsets = [0, 40], sizes = [16, 8], strides = [1, 1]} : vector<16x96xf32> to vector<16x8xf32>
    %18 = vector.shape_cast %17 : vector<16x8xf32> to vector<2x8x8xf32>
    %19 = vector.extract_strided_slice %5 {offsets = [0, 48], sizes = [16, 8], strides = [1, 1]} : vector<16x96xf32> to vector<16x8xf32>
    %20 = vector.shape_cast %19 : vector<16x8xf32> to vector<2x8x8xf32>
    %21 = vector.extract_strided_slice %5 {offsets = [0, 56], sizes = [16, 8], strides = [1, 1]} : vector<16x96xf32> to vector<16x8xf32>
    %22 = vector.shape_cast %21 : vector<16x8xf32> to vector<2x8x8xf32>
    %23 = tpu.concatenate %16, %18, %20, %22 in 0 : vector<2x8x8xf32>, vector<2x8x8xf32>, vector<2x8x8xf32>, vector<2x8x8xf32> -> vector<8x8x8xf32>
    %24 = vector.extract_strided_slice %5 {offsets = [0, 64], sizes = [16, 8], strides = [1, 1]} : vector<16x96xf32> to vector<16x8xf32>
    %25 = vector.shape_cast %24 : vector<16x8xf32> to vector<2x8x8xf32>
    %26 = vector.extract_strided_slice %5 {offsets = [0, 72], sizes = [16, 8], strides = [1, 1]} : vector<16x96xf32> to vector<16x8xf32>
    %27 = vector.shape_cast %26 : vector<16x8xf32> to vector<2x8x8xf32>
    %28 = vector.extract_strided_slice %5 {offsets = [0, 80], sizes = [16, 8], strides = [1, 1]} : vector<16x96xf32> to vector<16x8xf32>
    %29 = vector.shape_cast %28 : vector<16x8xf32> to vector<2x8x8xf32>
    %30 = vector.extract_strided_slice %5 {offsets = [0, 88], sizes = [16, 8], strides = [1, 1]} : vector<16x96xf32> to vector<16x8xf32>
    %31 = vector.shape_cast %30 : vector<16x8xf32> to vector<2x8x8xf32>
    %32 = tpu.concatenate %25, %27, %29, %31 in 0 : vector<2x8x8xf32>, vector<2x8x8xf32>, vector<2x8x8xf32>, vector<2x8x8xf32> -> vector<8x8x8xf32>
    %c0_5 = arith.constant 0 : index
    %c0_6 = arith.constant 0 : index
    %c0_7 = arith.constant 0 : index
    %33 = vector.load %arg1[%c0_5, %c0_6, %c0_7] : memref<2x1x8xf32, #tpu.memory_space<vmem>>, vector<2x1x8xf32>
    %34 = vector.shape_cast %33 : vector<2x1x8xf32> to vector<2x1x8xf32>
    %35 = vector.broadcast %34 : vector<2x1x8xf32> to vector<2x8x8xf32>
    %36 = vector.shape_cast %35 : vector<2x8x8xf32> to vector<1x2x8x8xf32>
    %37 = vector.shape_cast %36 : vector<1x2x8x8xf32> to vector<1x2x8x8xf32>
    %38 = vector.broadcast %37 : vector<1x2x8x8xf32> to vector<4x2x8x8xf32>
    %39 = vector.shape_cast %38 : vector<4x2x8x8xf32> to vector<8x8x8xf32>
    "tpu.trace_start"() <{level = 10 : i32, message = "bqd,bkd->bqk"}> : () -> ()
    %cst_8 = arith.constant dense<0.000000e+00> : vector<8x8x8xf32>
    %40 = tpu.matmul %14, %23, %cst_8 {dimension_numbers = #tpu.dot_dimension_numbers<[2], [2], [1], [1], [0, 0, 0, 1, 1, 1], [0], [0]>} : vector<8x8x8xf32>, vector<8x8x8xf32>, vector<8x8x8xf32> -> vector<8x8x8xf32>
    "tpu.trace_stop"() : () -> ()
    %41 = arith.addf %40, %39 : vector<8x8x8xf32>
    %cst_9 = arith.constant dense<0xFF800000> : vector<8x8xf32>
    %42 = vector.multi_reduction <maximumf>, %41, %cst_9 [2] : vector<8x8x8xf32> to vector<8x8xf32>
    %43 = vector.shape_cast %42 : vector<8x8xf32> to vector<8x8x1xf32>
    %44 = vector.broadcast %43 : vector<8x8x1xf32> to vector<8x8x8xf32>
    %45 = arith.subf %41, %44 : vector<8x8x8xf32>
    %46 = math.exp %45 : vector<8x8x8xf32>
    %cst_10 = arith.constant dense<0.000000e+00> : vector<8x8xf32>
    %47 = vector.multi_reduction <add>, %46, %cst_10 [2] : vector<8x8x8xf32> to vector<8x8xf32>
    %48 = vector.shape_cast %47 : vector<8x8xf32> to vector<8x8x1xf32>
    %49 = tpu.reciprocal %48 {approx = true} : vector<8x8x1xf32> -> vector<8x8x1xf32>
    %50 = vector.broadcast %49 : vector<8x8x1xf32> to vector<8x8x8xf32>
    %51 = arith.mulf %46, %50 : vector<8x8x8xf32>
    "tpu.trace_start"() <{level = 10 : i32, message = "bqk,bkd->bqd"}> : () -> ()
    %cst_11 = arith.constant dense<0.000000e+00> : vector<8x8x8xf32>
    %52 = tpu.matmul %51, %32, %cst_11 {dimension_numbers = #tpu.dot_dimension_numbers<[2], [1], [1], [2], [0, 0, 0, 1, 1, 2], [0], [0]>} : vector<8x8x8xf32>, vector<8x8x8xf32>, vector<8x8x8xf32> -> vector<8x8x8xf32>
    "tpu.trace_stop"() : () -> ()
    %53 = vector.shape_cast %52 : vector<8x8x8xf32> to vector<4x2x8x8xf32>
    %54 = vector.extract_strided_slice %53 {offsets = [0, 0, 0, 0], sizes = [1, 2, 8, 8], strides = [1, 1, 1, 1]} : vector<4x2x8x8xf32> to vector<1x2x8x8xf32>
    %55 = vector.shape_cast %54 : vector<1x2x8x8xf32> to vector<2x8x8xf32>
    %56 = vector.shape_cast %55 : vector<2x8x8xf32> to vector<16x8xf32>
    %57 = vector.extract_strided_slice %53 {offsets = [1, 0, 0, 0], sizes = [1, 2, 8, 8], strides = [1, 1, 1, 1]} : vector<4x2x8x8xf32> to vector<1x2x8x8xf32>
    %58 = vector.shape_cast %57 : vector<1x2x8x8xf32> to vector<2x8x8xf32>
    %59 = vector.shape_cast %58 : vector<2x8x8xf32> to vector<16x8xf32>
    %60 = vector.extract_strided_slice %53 {offsets = [2, 0, 0, 0], sizes = [1, 2, 8, 8], strides = [1, 1, 1, 1]} : vector<4x2x8x8xf32> to vector<1x2x8x8xf32>
    %61 = vector.shape_cast %60 : vector<1x2x8x8xf32> to vector<2x8x8xf32>
    %62 = vector.shape_cast %61 : vector<2x8x8xf32> to vector<16x8xf32>
    %63 = vector.extract_strided_slice %53 {offsets = [3, 0, 0, 0], sizes = [1, 2, 8, 8], strides = [1, 1, 1, 1]} : vector<4x2x8x8xf32> to vector<1x2x8x8xf32>
    %64 = vector.shape_cast %63 : vector<1x2x8x8xf32> to vector<2x8x8xf32>
    %65 = vector.shape_cast %64 : vector<2x8x8xf32> to vector<16x8xf32>
    %66 = tpu.concatenate %56, %59, %62, %65 in 1 : vector<16x8xf32>, vector<16x8xf32>, vector<16x8xf32>, vector<16x8xf32> -> vector<16x32xf32>
    %c0_12 = arith.constant 0 : index
    %c0_13 = arith.constant 0 : index
    %67 = vector.load %arg4[%c0_12, %c0_13] : memref<32x32xf32, #tpu.memory_space<vmem>>, vector<32x32xf32>
    %cst_14 = arith.constant dense<0.000000e+00> : vector<16x32xf32>
    %68 = tpu.matmul %66, %67, %cst_14 {dimension_numbers = #tpu.dot_dimension_numbers<[1], [0], [0], [1], [0, 0, 1, 1], [], []>} : vector<16x32xf32>, vector<32x32xf32>, vector<16x32xf32> -> vector<16x32xf32>
    %c0_15 = arith.constant 0 : index
    %c0_16 = arith.constant 0 : index
    %69 = vector.load %arg5[%c0_15, %c0_16] : memref<3x32xf32, #tpu.memory_space<vmem>>, vector<1x32xf32>
    %c1 = arith.constant 1 : index
    %c0_17 = arith.constant 0 : index
    %70 = vector.load %arg5[%c1, %c0_17] : memref<3x32xf32, #tpu.memory_space<vmem>>, vector<1x32xf32>
    %c2 = arith.constant 2 : index
    %c0_18 = arith.constant 0 : index
    %71 = vector.load %arg5[%c2, %c0_18] : memref<3x32xf32, #tpu.memory_space<vmem>>, vector<1x32xf32>
    %72 = vector.broadcast %69 : vector<1x32xf32> to vector<16x32xf32>
    %73 = arith.addf %68, %72 : vector<16x32xf32>
    %74 = arith.addf %73, %0 : vector<16x32xf32>
    %cst_19 = arith.constant dense<0.000000e+00> : vector<16xf32>
    %75 = vector.multi_reduction <add>, %74, %cst_19 [1] : vector<16x32xf32> to vector<16xf32>
    %76 = vector.shape_cast %75 : vector<16xf32> to vector<16x1xf32>
    %cst_20 = arith.constant 3.200000e+01 : f32
    %77 = vector.broadcast %cst_20 : f32 to vector<16x1xf32>
    %78 = arith.divf %76, %77 : vector<16x1xf32>
    %79 = vector.broadcast %78 : vector<16x1xf32> to vector<16x32xf32>
    %80 = arith.subf %74, %79 : vector<16x32xf32>
    %81 = arith.mulf %80, %80 : vector<16x32xf32>
    %cst_21 = arith.constant dense<0.000000e+00> : vector<16xf32>
    %82 = vector.multi_reduction <add>, %81, %cst_21 [1] : vector<16x32xf32> to vector<16xf32>
    %83 = vector.shape_cast %82 : vector<16xf32> to vector<16x1xf32>
    %cst_22 = arith.constant 3.200000e+01 : f32
    %84 = vector.broadcast %cst_22 : f32 to vector<16x1xf32>
    %85 = arith.divf %83, %84 : vector<16x1xf32>
    %86 = vector.broadcast %78 : vector<16x1xf32> to vector<16x32xf32>
    %87 = arith.subf %74, %86 : vector<16x32xf32>
    %cst_23 = arith.constant 9.99999996E-13 : f32
    %88 = vector.broadcast %cst_23 : f32 to vector<16x1xf32>
    %89 = arith.addf %85, %88 : vector<16x1xf32>
    %90 = math.rsqrt %89 : vector<16x1xf32>
    %91 = vector.broadcast %90 : vector<16x1xf32> to vector<16x32xf32>
    %92 = arith.mulf %87, %91 : vector<16x32xf32>
    %93 = vector.broadcast %70 : vector<1x32xf32> to vector<16x32xf32>
    %94 = arith.mulf %92, %93 : vector<16x32xf32>
    %95 = vector.broadcast %71 : vector<1x32xf32> to vector<16x32xf32>
    %96 = arith.addf %94, %95 : vector<16x32xf32>
    %c0_24 = arith.constant 0 : index
    %c0_25 = arith.constant 0 : index
    %97 = vector.load %arg6[%c0_24, %c0_25] : memref<16x32xf32, #tpu.memory_space<vmem>>, vector<16x32xf32>
    tpu.vector_store %arg6[%c0_24, %c0_25], %96 {strides = array<i32>} : memref<16x32xf32, #tpu.memory_space<vmem>>, vector<16x32xf32>,
    return
  }
}

</mosaic_0001>

<llo_original>
// kernel: bert_attention.1
$region0: #{bert_attention.1}
  #allocation0 [shape = 'u32[]', space=smem, size = 0x4, offset = 0x4, fixed_abs, tag = 'smem constant byte address 0x4 - core index']
  #allocation1 [shape = 'u32[144,128]{1,0:T(1,128)}', space=vmem, size = 0x12000, scoped, tag = 'internal scratch']
  %s0 = inlined_call_operand.hbm [shape: f32[16,32], index: 0, kind: input, shape index: {}]
  %s1 = inlined_call_operand.vmem [shape: f32[2,1,8], index: 1, kind: input, shape index: {}]
  %s2 = inlined_call_operand.hbm [shape: f32[32,96], index: 2, kind: input, shape index: {}]
  %s3 = inlined_call_operand.vmem [shape: f32[1,96], index: 3, kind: input, shape index: {}]
  %s4 = inlined_call_operand.hbm [shape: f32[32,32], index: 4, kind: input, shape index: {}]
  %s5 = inlined_call_operand.vmem [shape: f32[3,32], index: 5, kind: input, shape index: {}]
  %s6 = inlined_call_operand.hbm [shape: f32[16,32], index: 6, kind: output, shape index: {}]
  %s7 = sld [smem:[#allocation0]]
  $region46: #{bert_attention.1} parent=0
    _
  %s9 = ssub.s32 1, %s7
  %s10 = scalar_select 0, %s9, %s7
  $region1: #{bert_attention.1} parent=0
    #allocation2 [shape = 'u8[8192]{0}', space=vmem, size = 0x2000, scoped, tag = 'input window, operand 0, single buffered']
    #allocation3 [shape = 's32[1]{0}', space=sflag, size = 0x4, scoped, tag = 'scoped memory for bert_attention.1']
    #allocation4 [shape = 's32[1]{0}', space=sflag, size = 0x4, scoped, tag = 'scoped memory for bert_attention.1']
    #allocation5 [shape = 'u8[16384]{0}', space=vmem, size = 0x4000, scoped, tag = 'input window, operand 2, single buffered']
    #allocation6 [shape = 's32[1]{0}', space=sflag, size = 0x4, scoped, tag = 'scoped memory for bert_attention.1']
    #allocation7 [shape = 'u8[16384]{0}', space=vmem, size = 0x4000, scoped, tag = 'input window, operand 4, single buffered']
    #allocation8 [shape = 'u8[8192]{0}', space=vmem, size = 0x2000, scoped, tag = 'output window, operand 0, single buffered']
    %11 = vsyncpa [#allocation3], 0
    %12 = vsyncpa [#allocation6], 0
    %13 = vsyncpa [#allocation4], 0
    // Predicated region
    $region2: #{bert_attention.1} parent=1 // pred_check
      _
    $region3: #{bert_attention.1} parent=1 // pred_check_branch
      %15 = sbr.rel (0) target = $region5
    $region4: #{bert_attention.1} parent=1 // pred_region
      %s17 = ssub.s32 256, 256
      %18 = vsyncadd [#allocation3], %s17
      %s19 = sshll.u32 [#allocation2], 4
      %s20 = int_to_ptr.vmem [resolvable:$true] %s19
      %25 = dma.hbm_to_vmem [thread:$0]  %s0, 256, %s20, [#allocation3], 128, 128, 8
    $region5: #{bert_attention.1} parent=1 // pred_fallthru
      _
    // Predicated region
    $region6: #{bert_attention.1} parent=1 // pred_check
      _
    $region7: #{bert_attention.1} parent=1 // pred_check_branch
      %27 = sbr.rel (0) target = $region9
    $region8: #{bert_attention.1} parent=1 // pred_region
      _
    $region9: #{bert_attention.1} parent=1 // pred_fallthru
      _
    // Predicated region
    $region10: #{bert_attention.1} parent=1 // pred_check
      _
    $region11: #{bert_attention.1} parent=1 // pred_check_branch
      %29 = sbr.rel (0) target = $region13
    $region12: #{bert_attention.1} parent=1 // pred_region
      %s31 = ssub.s32 512, 512
      %32 = vsyncadd [#allocation6], %s31
      %s33 = sshll.u32 [#allocation5], 4
      %s34 = int_to_ptr.vmem [resolvable:$true] %s33
      %39 = dma.hbm_to_vmem [thread:$0]  %s2, 512, %s34, [#allocation6], 128, 128, 8
    $region13: #{bert_attention.1} parent=1 // pred_fallthru
      _
    // Predicated region
    $region14: #{bert_attention.1} parent=1 // pred_check
      _
    $region15: #{bert_attention.1} parent=1 // pred_check_branch
      %41 = sbr.rel (0) target = $region17
    $region16: #{bert_attention.1} parent=1 // pred_region
      _
    $region17: #{bert_attention.1} parent=1 // pred_fallthru
      _
    // Predicated region
    $region18: #{bert_attention.1} parent=1 // pred_check
      _
    $region19: #{bert_attention.1} parent=1 // pred_check_branch
      %43 = sbr.rel (0) target = $region21
    $region20: #{bert_attention.1} parent=1 // pred_region
      %s45 = ssub.s32 512, 512
      %46 = vsyncadd [#allocation6], %s45
      %s47 = sshll.u32 [#allocation7], 4
      %s48 = int_to_ptr.vmem [resolvable:$true] %s47
      %53 = dma.hbm_to_vmem [thread:$0]  %s4, 512, %s48, [#allocation6], 128, 128, 8
    $region21: #{bert_attention.1} parent=1 // pred_fallthru
      _
    // Predicated region
    $region22: #{bert_attention.1} parent=1 // pred_check
      _
    $region23: #{bert_attention.1} parent=1 // pred_check_branch
      %55 = sbr.rel (0) target = $region25
    $region24: #{bert_attention.1} parent=1 // pred_region
      _
    $region25: #{bert_attention.1} parent=1 // pred_fallthru
      _
    // Predicated region
    $region26: #{bert_attention.1} parent=1 // pred_check
      _
    $region27: #{bert_attention.1} parent=1 // pred_check_branch
      %57 = sbr.rel (0) target = $region29
    $region28: #{bert_attention.1} parent=1 // pred_region
      %58 = dma.done [#allocation3], 256
    $region29: #{bert_attention.1} parent=1 // pred_fallthru
      _
    // Predicated region
    $region30: #{bert_attention.1} parent=1 // pred_check
      _
    $region31: #{bert_attention.1} parent=1 // pred_check_branch
      %60 = sbr.rel (0) target = $region33
    $region32: #{bert_attention.1} parent=1 // pred_region
      %61 = dma.done [#allocation6], 512
    $region33: #{bert_attention.1} parent=1 // pred_fallthru
      _
    // Predicated region
    $region34: #{bert_attention.1} parent=1 // pred_check
      _
    $region35: #{bert_attention.1} parent=1 // pred_check_branch
      %63 = sbr.rel (0) target = $region37
    $region36: #{bert_attention.1} parent=1 // pred_region
      %64 = dma.done [#allocation6], 512
    $region37: #{bert_attention.1} parent=1 // pred_fallthru
      _
    %v65 = vld [vmem:[#allocation2] sm:$0xff]
    %v66 = vld [vmem:[#allocation2 + $0x8] sm:$0xff]
    %v67 = vld [vmem:[#allocation5] sm:$0xff]
    %v68 = vld [vmem:[#allocation5 + $0x8] sm:$0xff]
    %v69 = vld [vmem:[#allocation5 + $0x10] sm:$0xff]
    %v70 = vld [vmem:[#allocation5 + $0x18] sm:$0xff]
    %v71 = vld [vmem:[%s3] sm:$0x1]
    %v73 = vlaneseq
    %v74 = vshrl.u32 %v73, 7
    %v75 = vsub.s32 0, %v74
    %v76 = vrot.slane %v71, %v75
    %vm78 = vcmask 261120
    %v80 = vsel %vm78, %v65, 0
    %v83 = vsel %vm78, %v66, 0
    %85 = vmatprep.subr.mxu0 0.0
    %86 = vmatpush1.msra.mxu0 0.0
    %87 = vmatprep.subr.mxu0 0.0
    %88 = vmatpush1.msra.mxu0 0.0
    %89 = vmatprep.subr.mxu0 0.0
    %90 = vmatpush1.msra.mxu0 0.0
    %91 = vmatprep.subr.mxu0 0.0
    %92 = vmatpush1.msra.mxu0 0.0
    %93 = vmatprep.subr.mxu0 0.0
    %94 = vmatpush1.msra.mxu0 0.0
    %95 = vmatprep.subr.mxu0 0.0
    %96 = vmatpush1.msra.mxu0 0.0
    %97 = vmatprep.subr.mxu0 0.0
    %98 = vmatpush1.msra.mxu0 0.0
    %99 = vmatprep.subr.mxu0 0.0
    %100 = vmatpush1.msra.mxu0 0.0
    %101 = vmatprep.subr.mxu0 0.0
    %102 = vmatpush1.msra.mxu0 0.0
    %103 = vmatprep.subr.mxu0 0.0
    %104 = vmatpush1.msra.mxu0 0.0
    %105 = vmatprep.subr.mxu0 0.0
    %106 = vmatpush1.msra.mxu0 0.0
    %107 = vmatprep.subr.mxu0 0.0
    %108 = vmatpush1.msra.mxu0 0.0
    %109 = vmatprep.subr.mxu0 0.0
    %110 = vmatpush1.msra.mxu0 %v70
    %111 = vmatprep.subr.mxu0 0.0
    %112 = vmatpush1.msra.mxu0 %v69
    %113 = vmatprep.subr.mxu0 0.0
    %114 = vmatpush1.msra.mxu0 %v68
    %115 = vmatprep.subr.mxu0 0.0
    %116 = vmatpush1.msra.mxu0 %v67
    %117 = vmatprep.subr.mxu0 0.0
    %118 = vmatpush2.msra.mxu0 0.0
    %119 = vmatprep.subr.mxu0 0.0
    %120 = vmatpush2.msra.mxu0 0.0
    %121 = vmatprep.subr.mxu0 0.0
    %122 = vmatpush2.msra.mxu0 0.0
    %123 = vmatprep.subr.mxu0 0.0
    %124 = vmatpush2.msra.mxu0 0.0
    %125 = vmatprep.subr.mxu0 0.0
    %126 = vmatpush2.msra.mxu0 0.0
    %127 = vmatprep.subr.mxu0 0.0
    %128 = vmatpush2.msra.mxu0 0.0
    %129 = vmatprep.subr.mxu0 0.0
    %130 = vmatpush2.msra.mxu0 0.0
    %131 = vmatprep.subr.mxu0 0.0
    %132 = vmatpush2.msra.mxu0 0.0
    %133 = vmatprep.subr.mxu0 0.0
    %134 = vmatpush2.msra.mxu0 0.0
    %135 = vmatprep.subr.mxu0 0.0
    %136 = vmatpush2.msra.mxu0 0.0
    %137 = vmatprep.subr.mxu0 0.0
    %138 = vmatpush2.msra.mxu0 0.0
    %139 = vmatprep.subr.mxu0 0.0
    %140 = vmatpush2.msra.mxu0 0.0
    %141 = vmatprep.subr.mxu0 0.0
    %142 = vmatpush2.msra.mxu0 0.0
    %143 = vmatprep.subr.mxu0 0.0
    %144 = vmatpush2.msra.mxu0 0.0
    %145 = vmatprep.subr.mxu0 0.0
    %146 = vmatpush2.msra.mxu0 0.0
    %147 = vmatprep.subr.mxu0 0.0
    %148 = vmatpush2.msra.mxu0 0.0
    %149 = vmatprep.mubr.f32.mxu0 0.0
    %150 = vmatmul.mubr.f32.gmra.mxu0 %v80
    %v151 = vpop.f32.mrf.mxu0
    %v152 = vadd.f32 %v76, %v151
    %v153 = vpop.f32.mrf.mxu0
    %154 = vmatprep.mubr.f32.mxu0 0.0
    %155 = vmatmul.mubr.f32.gmra.mxu0 %v83
    %v156 = vpop.f32.mrf.mxu0
    %v157 = vadd.f32 %v76, %v156
    %v158 = vpop.f32.mrf.mxu0
    %159 = vdwg.mxu0
    %162 = vrot.lane.b32.xlu0 %v152, 120
    %v163 = vpop.permute.xlu0 %162
    %164 = vrot.lane.b32.xlu0 %v157, 120
    %v165 = vpop.permute.xlu0 %164
    %166 = vrot.lane.b32.xlu0 %v152, 112
    %v167 = vpop.permute.xlu0 %166
    %168 = vrot.lane.b32.xlu0 %v157, 112
    %v169 = vpop.permute.xlu0 %168
    %170 = vrot.lane.b32.xlu0 %v152, 104
    %v171 = vpop.permute.xlu0 %170
    %172 = vrot.lane.b32.xlu0 %v157, 104
    %v173 = vpop.permute.xlu0 %172
    %v174 = vld [vmem:[%s1] sm:$0x1]
    %v175 = vld [vmem:[%s1 + $0x1] sm:$0x1]
    %v178 = vlaneseq
    %v179 = vshrl.u32 %v178, 7
    %v180 = vsub.s32 0, %v179
    %v181 = vrot.slane %v174, %v180
    %v182 = vlaneseq
    %v183 = vshrl.u32 %v182, 7
    %v184 = vsub.s32 0, %v183
    %v185 = vrot.slane %v175, %v184
    %188 = vrot.lane.b32.xlu0 %v152, 96
    %v189 = vpop.permute.xlu0 %188
    %vm190 = vcmask 64512
    %v191 = vsel %vm190, %v152, 0
    %v193 = vsel %vm190, %v189, 0
    %195 = vmatprep.subr.mxu0 0.0
    %196 = vmatpush1.xpose.msra.mxu0 0.0
    %197 = vmatprep.subr.mxu0 0.0
    %198 = vmatpush1.xpose.msra.mxu0 0.0
    %199 = vmatprep.subr.mxu0 0.0
    %200 = vmatpush1.xpose.msra.mxu0 0.0
    %201 = vmatprep.subr.mxu0 0.0
    %202 = vmatpush1.xpose.msra.mxu0 0.0
    %203 = vmatprep.subr.mxu0 0.0
    %204 = vmatpush1.xpose.msra.mxu0 0.0
    %205 = vmatprep.subr.mxu0 0.0
    %206 = vmatpush1.xpose.msra.mxu0 0.0
    %207 = vmatprep.subr.mxu0 0.0
    %208 = vmatpush1.xpose.msra.mxu0 0.0
    %209 = vmatprep.subr.mxu0 0.0
    %210 = vmatpush1.xpose.msra.mxu0 0.0
    %211 = vmatprep.subr.mxu0 0.0
    %212 = vmatpush1.xpose.msra.mxu0 0.0
    %213 = vmatprep.subr.mxu0 0.0
    %214 = vmatpush1.xpose.msra.mxu0 0.0
    %215 = vmatprep.subr.mxu0 0.0
    %216 = vmatpush1.xpose.msra.mxu0 0.0
    %217 = vmatprep.subr.mxu0 0.0
    %218 = vmatpush1.xpose.msra.mxu0 0.0
    %219 = vmatprep.subr.mxu0 0.0
    %220 = vmatpush1.xpose.msra.mxu0 0.0
    %221 = vmatprep.subr.mxu0 0.0
    %222 = vmatpush1.xpose.msra.mxu0 0.0
    %223 = vmatprep.subr.mxu0 0.0
    %224 = vmatpush1.xpose.msra.mxu0 0.0
    %225 = vmatprep.subr.mxu0 0.0
    %226 = vmatpush1.xpose.msra.mxu0 %v193
    %227 = vmatprep.subr.mxu0 0.0
    %228 = vmatpush2.xpose.msra.mxu0 0.0
    %229 = vmatprep.subr.mxu0 0.0
    %230 = vmatpush2.xpose.msra.mxu0 0.0
    %231 = vmatprep.subr.mxu0 0.0
    %232 = vmatpush2.xpose.msra.mxu0 0.0
    %233 = vmatprep.subr.mxu0 0.0
    %234 = vmatpush2.xpose.msra.mxu0 0.0
    %235 = vmatprep.subr.mxu0 0.0
    %236 = vmatpush2.xpose.msra.mxu0 0.0
    %237 = vmatprep.subr.mxu0 0.0
    %238 = vmatpush2.xpose.msra.mxu0 0.0
    %239 = vmatprep.subr.mxu0 0.0
    %240 = vmatpush2.xpose.msra.mxu0 0.0
    %241 = vmatprep.subr.mxu0 0.0
    %242 = vmatpush2.xpose.msra.mxu0 0.0
    %243 = vmatprep.subr.mxu0 0.0
    %244 = vmatpush2.xpose.msra.mxu0 0.0
    %245 = vmatprep.subr.mxu0 0.0
    %246 = vmatpush2.xpose.msra.mxu0 0.0
    %247 = vmatprep.subr.mxu0 0.0
    %248 = vmatpush2.xpose.msra.mxu0 0.0
    %249 = vmatprep.subr.mxu0 0.0
    %250 = vmatpush2.xpose.msra.mxu0 0.0
    %251 = vmatprep.subr.mxu0 0.0
    %252 = vmatpush2.xpose.msra.mxu0 0.0
    %253 = vmatprep.subr.mxu0 0.0
    %254 = vmatpush2.xpose.msra.mxu0 0.0
    %255 = vmatprep.subr.mxu0 0.0
    %256 = vmatpush2.xpose.msra.mxu0 0.0
    %257 = vmatprep.subr.mxu0 0.0
    %258 = vmatpush2.xpose.msra.mxu0 0.0
    %259 = vmatprep.mubr.f32.mxu0 0.0
    %260 = vmatmul.mubr.f32.gmra.mxu0 %v191
    %v261 = vpop.f32.mrf.mxu0
    %v262 = vadd.f32 %v181, %v261
    %v263 = vpop.f32.mrf.mxu0
    %264 = vdwg.mxu0
    %265 = vrot.lane.b32.xlu0 %v157, 96
    %v266 = vpop.permute.xlu0 %265
    %v267 = vsel %vm190, %v157, 0
    %v269 = vsel %vm190, %v266, 0
    %271 = vmatprep.subr.mxu0 0.0
    %272 = vmatpush1.xpose.msra.mxu0 0.0
    %273 = vmatprep.subr.mxu0 0.0
    %274 = vmatpush1.xpose.msra.mxu0 0.0
    %275 = vmatprep.subr.mxu0 0.0
    %276 = vmatpush1.xpose.msra.mxu0 0.0
    %277 = vmatprep.subr.mxu0 0.0
    %278 = vmatpush1.xpose.msra.mxu0 0.0
    %279 = vmatprep.subr.mxu0 0.0
    %280 = vmatpush1.xpose.msra.mxu0 0.0
    %281 = vmatprep.subr.mxu0 0.0
    %282 = vmatpush1.xpose.msra.mxu0 0.0
    %283 = vmatprep.subr.mxu0 0.0
    %284 = vmatpush1.xpose.msra.mxu0 0.0
    %285 = vmatprep.subr.mxu0 0.0
    %286 = vmatpush1.xpose.msra.mxu0 0.0
    %287 = vmatprep.subr.mxu0 0.0
    %288 = vmatpush1.xpose.msra.mxu0 0.0
    %289 = vmatprep.subr.mxu0 0.0
    %290 = vmatpush1.xpose.msra.mxu0 0.0
    %291 = vmatprep.subr.mxu0 0.0
    %292 = vmatpush1.xpose.msra.mxu0 0.0
    %293 = vmatprep.subr.mxu0 0.0
    %294 = vmatpush1.xpose.msra.mxu0 0.0
    %295 = vmatprep.subr.mxu0 0.0
    %296 = vmatpush1.xpose.msra.mxu0 0.0
    %297 = vmatprep.subr.mxu0 0.0
    %298 = vmatpush1.xpose.msra.mxu0 0.0
    %299 = vmatprep.subr.mxu0 0.0
    %300 = vmatpush1.xpose.msra.mxu0 0.0
    %301 = vmatprep.subr.mxu0 0.0
    %302 = vmatpush1.xpose.msra.mxu0 %v269
    %303 = vmatprep.subr.mxu0 0.0
    %304 = vmatpush2.xpose.msra.mxu0 0.0
    %305 = vmatprep.subr.mxu0 0.0
    %306 = vmatpush2.xpose.msra.mxu0 0.0
    %307 = vmatprep.subr.mxu0 0.0
    %308 = vmatpush2.xpose.msra.mxu0 0.0
    %309 = vmatprep.subr.mxu0 0.0
    %310 = vmatpush2.xpose.msra.mxu0 0.0
    %311 = vmatprep.subr.mxu0 0.0
    %312 = vmatpush2.xpose.msra.mxu0 0.0
    %313 = vmatprep.subr.mxu0 0.0
    %314 = vmatpush2.xpose.msra.mxu0 0.0
    %315 = vmatprep.subr.mxu0 0.0
    %316 = vmatpush2.xpose.msra.mxu0 0.0
    %317 = vmatprep.subr.mxu0 0.0
    %318 = vmatpush2.xpose.msra.mxu0 0.0
    %319 = vmatprep.subr.mxu0 0.0
    %320 = vmatpush2.xpose.msra.mxu0 0.0
    %321 = vmatprep.subr.mxu0 0.0
    %322 = vmatpush2.xpose.msra.mxu0 0.0
    %323 = vmatprep.subr.mxu0 0.0
    %324 = vmatpush2.xpose.msra.mxu0 0.0
    %325 = vmatprep.subr.mxu0 0.0
    %326 = vmatpush2.xpose.msra.mxu0 0.0
    %327 = vmatprep.subr.mxu0 0.0
    %328 = vmatpush2.xpose.msra.mxu0 0.0
    %329 = vmatprep.subr.mxu0 0.0
    %330 = vmatpush2.xpose.msra.mxu0 0.0
    %331 = vmatprep.subr.mxu0 0.0
    %332 = vmatpush2.xpose.msra.mxu0 0.0
    %333 = vmatprep.subr.mxu0 0.0
    %334 = vmatpush2.xpose.msra.mxu0 0.0
    %335 = vmatprep.mubr.f32.mxu0 0.0
    %336 = vmatmul.mubr.f32.gmra.mxu0 %v267
    %v337 = vpop.f32.mrf.mxu0
    %v338 = vadd.f32 %v185, %v337
    %v339 = vpop.f32.mrf.mxu0
    %340 = vdwg.mxu0
    %341 = vrot.lane.b32.xlu0 %v163, 96
    %v342 = vpop.permute.xlu0 %341
    %v343 = vsel %vm190, %v163, 0
    %v345 = vsel %vm190, %v342, 0
    %347 = vmatprep.subr.mxu0 0.0
    %348 = vmatpush1.xpose.msra.mxu0 0.0
    %349 = vmatprep.subr.mxu0 0.0
    %350 = vmatpush1.xpose.msra.mxu0 0.0
    %351 = vmatprep.subr.mxu0 0.0
    %352 = vmatpush1.xpose.msra.mxu0 0.0
    %353 = vmatprep.subr.mxu0 0.0
    %354 = vmatpush1.xpose.msra.mxu0 0.0
    %355 = vmatprep.subr.mxu0 0.0
    %356 = vmatpush1.xpose.msra.mxu0 0.0
    %357 = vmatprep.subr.mxu0 0.0
    %358 = vmatpush1.xpose.msra.mxu0 0.0
    %359 = vmatprep.subr.mxu0 0.0
    %360 = vmatpush1.xpose.msra.mxu0 0.0
    %361 = vmatprep.subr.mxu0 0.0
    %362 = vmatpush1.xpose.msra.mxu0 0.0
    %363 = vmatprep.subr.mxu0 0.0
    %364 = vmatpush1.xpose.msra.mxu0 0.0
    %365 = vmatprep.subr.mxu0 0.0
    %366 = vmatpush1.xpose.msra.mxu0 0.0
    %367 = vmatprep.subr.mxu0 0.0
    %368 = vmatpush1.xpose.msra.mxu0 0.0
    %369 = vmatprep.subr.mxu0 0.0
    %370 = vmatpush1.xpose.msra.mxu0 0.0
    %371 = vmatprep.subr.mxu0 0.0
    %372 = vmatpush1.xpose.msra.mxu0 0.0
    %373 = vmatprep.subr.mxu0 0.0
    %374 = vmatpush1.xpose.msra.mxu0 0.0
    %375 = vmatprep.subr.mxu0 0.0
    %376 = vmatpush1.xpose.msra.mxu0 0.0
    %377 = vmatprep.subr.mxu0 0.0
    %378 = vmatpush1.xpose.msra.mxu0 %v345
    %379 = vmatprep.subr.mxu0 0.0
    %380 = vmatpush2.xpose.msra.mxu0 0.0
    %381 = vmatprep.subr.mxu0 0.0
    %382 = vmatpush2.xpose.msra.mxu0 0.0
    %383 = vmatprep.subr.mxu0 0.0
    %384 = vmatpush2.xpose.msra.mxu0 0.0
    %385 = vmatprep.subr.mxu0 0.0
    %386 = vmatpush2.xpose.msra.mxu0 0.0
    %387 = vmatprep.subr.mxu0 0.0
    %388 = vmatpush2.xpose.msra.mxu0 0.0
    %389 = vmatprep.subr.mxu0 0.0
    %390 = vmatpush2.xpose.msra.mxu0 0.0
    %391 = vmatprep.subr.mxu0 0.0
    %392 = vmatpush2.xpose.msra.mxu0 0.0
    %393 = vmatprep.subr.mxu0 0.0
    %394 = vmatpush2.xpose.msra.mxu0 0.0
    %395 = vmatprep.subr.mxu0 0.0
    %396 = vmatpush2.xpose.msra.mxu0 0.0
    %397 = vmatprep.subr.mxu0 0.0
    %398 = vmatpush2.xpose.msra.mxu0 0.0
    %399 = vmatprep.subr.mxu0 0.0
    %400 = vmatpush2.xpose.msra.mxu0 0.0
    %401 = vmatprep.subr.mxu0 0.0
    %402 = vmatpush2.xpose.msra.mxu0 0.0
    %403 = vmatprep.subr.mxu0 0.0
    %404 = vmatpush2.xpose.msra.mxu0 0.0
    %405 = vmatprep.subr.mxu0 0.0
    %406 = vmatpush2.xpose.msra.mxu0 0.0
    %407 = vmatprep.subr.mxu0 0.0
    %408 = vmatpush2.xpose.msra.mxu0 0.0
    %409 = vmatprep.subr.mxu0 0.0
    %410 = vmatpush2.xpose.msra.mxu0 0.0
    %411 = vmatprep.mubr.f32.mxu0 0.0
    %412 = vmatmul.mubr.f32.gmra.mxu0 %v343
    %v413 = vpop.f32.mrf.mxu0
    %v414 = vadd.f32 %v181, %v413
    %v415 = vpop.f32.mrf.mxu0
    %416 = vdwg.mxu0
    %417 = vrot.lane.b32.xlu0 %v165, 96
    %v418 = vpop.permute.xlu0 %417
    %v419 = vsel %vm190, %v165, 0
    %v421 = vsel %vm190, %v418, 0
    %423 = vmatprep.subr.mxu0 0.0
    %424 = vmatpush1.xpose.msra.mxu0 0.0
    %425 = vmatprep.subr.mxu0 0.0
    %426 = vmatpush1.xpose.msra.mxu0 0.0
    %427 = vmatprep.subr.mxu0 0.0
    %428 = vmatpush1.xpose.msra.mxu0 0.0
    %429 = vmatprep.subr.mxu0 0.0
    %430 = vmatpush1.xpose.msra.mxu0 0.0
    %431 = vmatprep.subr.mxu0 0.0
    %432 = vmatpush1.xpose.msra.mxu0 0.0
    %433 = vmatprep.subr.mxu0 0.0
    %434 = vmatpush1.xpose.msra.mxu0 0.0
    %435 = vmatprep.subr.mxu0 0.0
    %436 = vmatpush1.xpose.msra.mxu0 0.0
    %437 = vmatprep.subr.mxu0 0.0
    %438 = vmatpush1.xpose.msra.mxu0 0.0
    %439 = vmatprep.subr.mxu0 0.0
    %440 = vmatpush1.xpose.msra.mxu0 0.0
    %441 = vmatprep.subr.mxu0 0.0
    %442 = vmatpush1.xpose.msra.mxu0 0.0
    %443 = vmatprep.subr.mxu0 0.0
    %444 = vmatpush1.xpose.msra.mxu0 0.0
    %445 = vmatprep.subr.mxu0 0.0
    %446 = vmatpush1.xpose.msra.mxu0 0.0
    %447 = vmatprep.subr.mxu0 0.0
    %448 = vmatpush1.xpose.msra.mxu0 0.0
    %449 = vmatprep.subr.mxu0 0.0
    %450 = vmatpush1.xpose.msra.mxu0 0.0
    %451 = vmatprep.subr.mxu0 0.0
    %452 = vmatpush1.xpose.msra.mxu0 0.0
    %453 = vmatprep.subr.mxu0 0.0
    %454 = vmatpush1.xpose.msra.mxu0 %v421
    %455 = vmatprep.subr.mxu0 0.0
    %456 = vmatpush2.xpose.msra.mxu0 0.0
    %457 = vmatprep.subr.mxu0 0.0
    %458 = vmatpush2.xpose.msra.mxu0 0.0
    %459 = vmatprep.subr.mxu0 0.0
    %460 = vmatpush2.xpose.msra.mxu0 0.0
    %461 = vmatprep.subr.mxu0 0.0
    %462 = vmatpush2.xpose.msra.mxu0 0.0
    %463 = vmatprep.subr.mxu0 0.0
    %464 = vmatpush2.xpose.msra.mxu0 0.0
    %465 = vmatprep.subr.mxu0 0.0
    %466 = vmatpush2.xpose.msra.mxu0 0.0
    %467 = vmatprep.subr.mxu0 0.0
    %468 = vmatpush2.xpose.msra.mxu0 0.0
    %469 = vmatprep.subr.mxu0 0.0
    %470 = vmatpush2.xpose.msra.mxu0 0.0
    %471 = vmatprep.subr.mxu0 0.0
    %472 = vmatpush2.xpose.msra.mxu0 0.0
    %473 = vmatprep.subr.mxu0 0.0
    %474 = vmatpush2.xpose.msra.mxu0 0.0
    %475 = vmatprep.subr.mxu0 0.0
    %476 = vmatpush2.xpose.msra.mxu0 0.0
    %477 = vmatprep.subr.mxu0 0.0
    %478 = vmatpush2.xpose.msra.mxu0 0.0
    %479 = vmatprep.subr.mxu0 0.0
    %480 = vmatpush2.xpose.msra.mxu0 0.0
    %481 = vmatprep.subr.mxu0 0.0
    %482 = vmatpush2.xpose.msra.mxu0 0.0
    %483 = vmatprep.subr.mxu0 0.0
    %484 = vmatpush2.xpose.msra.mxu0 0.0
    %485 = vmatprep.subr.mxu0 0.0
    %486 = vmatpush2.xpose.msra.mxu0 0.0
    %487 = vmatprep.mubr.f32.mxu0 0.0
    %488 = vmatmul.mubr.f32.gmra.mxu0 %v419
    %v489 = vpop.f32.mrf.mxu0
    %v490 = vadd.f32 %v185, %v489
    %v491 = vpop.f32.mrf.mxu0
    %492 = vdwg.mxu0
    %493 = vrot.lane.b32.xlu0 %v167, 96
    %v494 = vpop.permute.xlu0 %493
    %v495 = vsel %vm190, %v167, 0
    %v497 = vsel %vm190, %v494, 0
    %499 = vmatprep.subr.mxu0 0.0
    %500 = vmatpush1.xpose.msra.mxu0 0.0
    %501 = vmatprep.subr.mxu0 0.0
    %502 = vmatpush1.xpose.msra.mxu0 0.0
    %503 = vmatprep.subr.mxu0 0.0
    %504 = vmatpush1.xpose.msra.mxu0 0.0
    %505 = vmatprep.subr.mxu0 0.0
    %506 = vmatpush1.xpose.msra.mxu0 0.0
    %507 = vmatprep.subr.mxu0 0.0
    %508 = vmatpush1.xpose.msra.mxu0 0.0
    %509 = vmatprep.subr.mxu0 0.0
    %510 = vmatpush1.xpose.msra.mxu0 0.0
    %511 = vmatprep.subr.mxu0 0.0
    %512 = vmatpush1.xpose.msra.mxu0 0.0
    %513 = vmatprep.subr.mxu0 0.0
    %514 = vmatpush1.xpose.msra.mxu0 0.0
    %515 = vmatprep.subr.mxu0 0.0
    %516 = vmatpush1.xpose.msra.mxu0 0.0
    %517 = vmatprep.subr.mxu0 0.0
    %518 = vmatpush1.xpose.msra.mxu0 0.0
    %519 = vmatprep.subr.mxu0 0.0
    %520 = vmatpush1.xpose.msra.mxu0 0.0
    %521 = vmatprep.subr.mxu0 0.0
    %522 = vmatpush1.xpose.msra.mxu0 0.0
    %523 = vmatprep.subr.mxu0 0.0
    %524 = vmatpush1.xpose.msra.mxu0 0.0
    %525 = vmatprep.subr.mxu0 0.0
    %526 = vmatpush1.xpose.msra.mxu0 0.0
    %527 = vmatprep.subr.mxu0 0.0
    %528 = vmatpush1.xpose.msra.mxu0 0.0
    %529 = vmatprep.subr.mxu0 0.0
    %530 = vmatpush1.xpose.msra.mxu0 %v497
    %531 = vmatprep.subr.mxu0 0.0
    %532 = vmatpush2.xpose.msra.mxu0 0.0
    %533 = vmatprep.subr.mxu0 0.0
    %534 = vmatpush2.xpose.msra.mxu0 0.0
    %535 = vmatprep.subr.mxu0 0.0
    %536 = vmatpush2.xpose.msra.mxu0 0.0
    %537 = vmatprep.subr.mxu0 0.0
    %538 = vmatpush2.xpose.msra.mxu0 0.0
    %539 = vmatprep.subr.mxu0 0.0
    %540 = vmatpush2.xpose.msra.mxu0 0.0
    %541 = vmatprep.subr.mxu0 0.0
    %542 = vmatpush2.xpose.msra.mxu0 0.0
    %543 = vmatprep.subr.mxu0 0.0
    %544 = vmatpush2.xpose.msra.mxu0 0.0
    %545 = vmatprep.subr.mxu0 0.0
    %546 = vmatpush2.xpose.msra.mxu0 0.0
    %547 = vmatprep.subr.mxu0 0.0
    %548 = vmatpush2.xpose.msra.mxu0 0.0
    %549 = vmatprep.subr.mxu0 0.0
    %550 = vmatpush2.xpose.msra.mxu0 0.0
    %551 = vmatprep.subr.mxu0 0.0
    %552 = vmatpush2.xpose.msra.mxu0 0.0
    %553 = vmatprep.subr.mxu0 0.0
    %554 = vmatpush2.xpose.msra.mxu0 0.0
    %555 = vmatprep.subr.mxu0 0.0
    %556 = vmatpush2.xpose.msra.mxu0 0.0
    %557 = vmatprep.subr.mxu0 0.0
    %558 = vmatpush2.xpose.msra.mxu0 0.0
    %559 = vmatprep.subr.mxu0 0.0
    %560 = vmatpush2.xpose.msra.mxu0 0.0
    %561 = vmatprep.subr.mxu0 0.0
    %562 = vmatpush2.xpose.msra.mxu0 0.0
    %563 = vmatprep.mubr.f32.mxu0 0.0
    %564 = vmatmul.mubr.f32.gmra.mxu0 %v495
    %v565 = vpop.f32.mrf.mxu0
    %v566 = vadd.f32 %v181, %v565
    %v567 = vpop.f32.mrf.mxu0
    %568 = vdwg.mxu0
    %569 = vrot.lane.b32.xlu0 %v169, 96
    %v570 = vpop.permute.xlu0 %569
    %v571 = vsel %vm190, %v169, 0
    %v573 = vsel %vm190, %v570, 0
    %575 = vmatprep.subr.mxu0 0.0
    %576 = vmatpush1.xpose.msra.mxu0 0.0
    %577 = vmatprep.subr.mxu0 0.0
    %578 = vmatpush1.xpose.msra.mxu0 0.0
    %579 = vmatprep.subr.mxu0 0.0
    %580 = vmatpush1.xpose.msra.mxu0 0.0
    %581 = vmatprep.subr.mxu0 0.0
    %582 = vmatpush1.xpose.msra.mxu0 0.0
    %583 = vmatprep.subr.mxu0 0.0
    %584 = vmatpush1.xpose.msra.mxu0 0.0
    %585 = vmatprep.subr.mxu0 0.0
    %586 = vmatpush1.xpose.msra.mxu0 0.0
    %587 = vmatprep.subr.mxu0 0.0
    %588 = vmatpush1.xpose.msra.mxu0 0.0
    %589 = vmatprep.subr.mxu0 0.0
    %590 = vmatpush1.xpose.msra.mxu0 0.0
    %591 = vmatprep.subr.mxu0 0.0
    %592 = vmatpush1.xpose.msra.mxu0 0.0
    %593 = vmatprep.subr.mxu0 0.0
    %594 = vmatpush1.xpose.msra.mxu0 0.0
    %595 = vmatprep.subr.mxu0 0.0
    %596 = vmatpush1.xpose.msra.mxu0 0.0
    %597 = vmatprep.subr.mxu0 0.0
    %598 = vmatpush1.xpose.msra.mxu0 0.0
    %599 = vmatprep.subr.mxu0 0.0
    %600 = vmatpush1.xpose.msra.mxu0 0.0
    %601 = vmatprep.subr.mxu0 0.0
    %602 = vmatpush1.xpose.msra.mxu0 0.0
    %603 = vmatprep.subr.mxu0 0.0
    %604 = vmatpush1.xpose.msra.mxu0 0.0
    %605 = vmatprep.subr.mxu0 0.0
    %606 = vmatpush1.xpose.msra.mxu0 %v573
    %607 = vmatprep.subr.mxu0 0.0
    %608 = vmatpush2.xpose.msra.mxu0 0.0
    %609 = vmatprep.subr.mxu0 0.0
    %610 = vmatpush2.xpose.msra.mxu0 0.0
    %611 = vmatprep.subr.mxu0 0.0
    %612 = vmatpush2.xpose.msra.mxu0 0.0
    %613 = vmatprep.subr.mxu0 0.0
    %614 = vmatpush2.xpose.msra.mxu0 0.0
    %615 = vmatprep.subr.mxu0 0.0
    %616 = vmatpush2.xpose.msra.mxu0 0.0
    %617 = vmatprep.subr.mxu0 0.0
    %618 = vmatpush2.xpose.msra.mxu0 0.0
    %619 = vmatprep.subr.mxu0 0.0
    %620 = vmatpush2.xpose.msra.mxu0 0.0
    %621 = vmatprep.subr.mxu0 0.0
    %622 = vmatpush2.xpose.msra.mxu0 0.0
    %623 = vmatprep.subr.mxu0 0.0
    %624 = vmatpush2.xpose.msra.mxu0 0.0
    %625 = vmatprep.subr.mxu0 0.0
    %626 = vmatpush2.xpose.msra.mxu0 0.0
    %627 = vmatprep.subr.mxu0 0.0
    %628 = vmatpush2.xpose.msra.mxu0 0.0
    %629 = vmatprep.subr.mxu0 0.0
    %630 = vmatpush2.xpose.msra.mxu0 0.0
    %631 = vmatprep.subr.mxu0 0.0
    %632 = vmatpush2.xpose.msra.mxu0 0.0
    %633 = vmatprep.subr.mxu0 0.0
    %634 = vmatpush2.xpose.msra.mxu0 0.0
    %635 = vmatprep.subr.mxu0 0.0
    %636 = vmatpush2.xpose.msra.mxu0 0.0
    %637 = vmatprep.subr.mxu0 0.0
    %638 = vmatpush2.xpose.msra.mxu0 0.0
    %639 = vmatprep.mubr.f32.mxu0 0.0
    %640 = vmatmul.mubr.f32.gmra.mxu0 %v571
    %v641 = vpop.f32.mrf.mxu0
    %v642 = vadd.f32 %v185, %v641
    %v643 = vpop.f32.mrf.mxu0
    %644 = vdwg.mxu0
    %645 = vrot.lane.b32.xlu0 %v171, 96
    %v646 = vpop.permute.xlu0 %645
    %v647 = vsel %vm190, %v171, 0
    %v649 = vsel %vm190, %v646, 0
    %651 = vmatprep.subr.mxu0 0.0
    %652 = vmatpush1.xpose.msra.mxu0 0.0
    %653 = vmatprep.subr.mxu0 0.0
    %654 = vmatpush1.xpose.msra.mxu0 0.0
    %655 = vmatprep.subr.mxu0 0.0
    %656 = vmatpush1.xpose.msra.mxu0 0.0
    %657 = vmatprep.subr.mxu0 0.0
    %658 = vmatpush1.xpose.msra.mxu0 0.0
    %659 = vmatprep.subr.mxu0 0.0
    %660 = vmatpush1.xpose.msra.mxu0 0.0
    %661 = vmatprep.subr.mxu0 0.0
    %662 = vmatpush1.xpose.msra.mxu0 0.0
    %663 = vmatprep.subr.mxu0 0.0
    %664 = vmatpush1.xpose.msra.mxu0 0.0
    %665 = vmatprep.subr.mxu0 0.0
    %666 = vmatpush1.xpose.msra.mxu0 0.0
    %667 = vmatprep.subr.mxu0 0.0
    %668 = vmatpush1.xpose.msra.mxu0 0.0
    %669 = vmatprep.subr.mxu0 0.0
    %670 = vmatpush1.xpose.msra.mxu0 0.0
    %671 = vmatprep.subr.mxu0 0.0
    %672 = vmatpush1.xpose.msra.mxu0 0.0
    %673 = vmatprep.subr.mxu0 0.0
    %674 = vmatpush1.xpose.msra.mxu0 0.0
    %675 = vmatprep.subr.mxu0 0.0
    %676 = vmatpush1.xpose.msra.mxu0 0.0
    %677 = vmatprep.subr.mxu0 0.0
    %678 = vmatpush1.xpose.msra.mxu0 0.0
    %679 = vmatprep.subr.mxu0 0.0
    %680 = vmatpush1.xpose.msra.mxu0 0.0
    %681 = vmatprep.subr.mxu0 0.0
    %682 = vmatpush1.xpose.msra.mxu0 %v649
    %683 = vmatprep.subr.mxu0 0.0
    %684 = vmatpush2.xpose.msra.mxu0 0.0
    %685 = vmatprep.subr.mxu0 0.0
    %686 = vmatpush2.xpose.msra.mxu0 0.0
    %687 = vmatprep.subr.mxu0 0.0
    %688 = vmatpush2.xpose.msra.mxu0 0.0
    %689 = vmatprep.subr.mxu0 0.0
    %690 = vmatpush2.xpose.msra.mxu0 0.0
    %691 = vmatprep.subr.mxu0 0.0
    %692 = vmatpush2.xpose.msra.mxu0 0.0
    %693 = vmatprep.subr.mxu0 0.0
    %694 = vmatpush2.xpose.msra.mxu0 0.0
    %695 = vmatprep.subr.mxu0 0.0
    %696 = vmatpush2.xpose.msra.mxu0 0.0
    %697 = vmatprep.subr.mxu0 0.0
    %698 = vmatpush2.xpose.msra.mxu0 0.0
    %699 = vmatprep.subr.mxu0 0.0
    %700 = vmatpush2.xpose.msra.mxu0 0.0
    %701 = vmatprep.subr.mxu0 0.0
    %702 = vmatpush2.xpose.msra.mxu0 0.0
    %703 = vmatprep.subr.mxu0 0.0
    %704 = vmatpush2.xpose.msra.mxu0 0.0
    %705 = vmatprep.subr.mxu0 0.0
    %706 = vmatpush2.xpose.msra.mxu0 0.0
    %707 = vmatprep.subr.mxu0 0.0
    %708 = vmatpush2.xpose.msra.mxu0 0.0
    %709 = vmatprep.subr.mxu0 0.0
    %710 = vmatpush2.xpose.msra.mxu0 0.0
    %711 = vmatprep.subr.mxu0 0.0
    %712 = vmatpush2.xpose.msra.mxu0 0.0
    %713 = vmatprep.subr.mxu0 0.0
    %714 = vmatpush2.xpose.msra.mxu0 0.0
    %715 = vmatprep.mubr.f32.mxu0 0.0
    %716 = vmatmul.mubr.f32.gmra.mxu0 %v647
    %v717 = vpop.f32.mrf.mxu0
    %v718 = vadd.f32 %v181, %v717
    %v719 = vpop.f32.mrf.mxu0
    %720 = vdwg.mxu0
    %721 = vrot.lane.b32.xlu0 %v173, 96
    %v722 = vpop.permute.xlu0 %721
    %v723 = vsel %vm190, %v173, 0
    %v725 = vsel %vm190, %v722, 0
    %727 = vmatprep.subr.mxu0 0.0
    %728 = vmatpush1.xpose.msra.mxu0 0.0
    %729 = vmatprep.subr.mxu0 0.0
    %730 = vmatpush1.xpose.msra.mxu0 0.0
    %731 = vmatprep.subr.mxu0 0.0
    %732 = vmatpush1.xpose.msra.mxu0 0.0
    %733 = vmatprep.subr.mxu0 0.0
    %734 = vmatpush1.xpose.msra.mxu0 0.0
    %735 = vmatprep.subr.mxu0 0.0
    %736 = vmatpush1.xpose.msra.mxu0 0.0
    %737 = vmatprep.subr.mxu0 0.0
    %738 = vmatpush1.xpose.msra.mxu0 0.0
    %739 = vmatprep.subr.mxu0 0.0
    %740 = vmatpush1.xpose.msra.mxu0 0.0
    %741 = vmatprep.subr.mxu0 0.0
    %742 = vmatpush1.xpose.msra.mxu0 0.0
    %743 = vmatprep.subr.mxu0 0.0
    %744 = vmatpush1.xpose.msra.mxu0 0.0
    %745 = vmatprep.subr.mxu0 0.0
    %746 = vmatpush1.xpose.msra.mxu0 0.0
    %747 = vmatprep.subr.mxu0 0.0
    %748 = vmatpush1.xpose.msra.mxu0 0.0
    %749 = vmatprep.subr.mxu0 0.0
    %750 = vmatpush1.xpose.msra.mxu0 0.0
    %751 = vmatprep.subr.mxu0 0.0
    %752 = vmatpush1.xpose.msra.mxu0 0.0
    %753 = vmatprep.subr.mxu0 0.0
    %754 = vmatpush1.xpose.msra.mxu0 0.0
    %755 = vmatprep.subr.mxu0 0.0
    %756 = vmatpush1.xpose.msra.mxu0 0.0
    %757 = vmatprep.subr.mxu0 0.0
    %758 = vmatpush1.xpose.msra.mxu0 %v725
    %759 = vmatprep.subr.mxu0 0.0
    %760 = vmatpush2.xpose.msra.mxu0 0.0
    %761 = vmatprep.subr.mxu0 0.0
    %762 = vmatpush2.xpose.msra.mxu0 0.0
    %763 = vmatprep.subr.mxu0 0.0
    %764 = vmatpush2.xpose.msra.mxu0 0.0
    %765 = vmatprep.subr.mxu0 0.0
    %766 = vmatpush2.xpose.msra.mxu0 0.0
    %767 = vmatprep.subr.mxu0 0.0
    %768 = vmatpush2.xpose.msra.mxu0 0.0
    %769 = vmatprep.subr.mxu0 0.0
    %770 = vmatpush2.xpose.msra.mxu0 0.0
    %771 = vmatprep.subr.mxu0 0.0
    %772 = vmatpush2.xpose.msra.mxu0 0.0
    %773 = vmatprep.subr.mxu0 0.0
    %774 = vmatpush2.xpose.msra.mxu0 0.0
    %775 = vmatprep.subr.mxu0 0.0
    %776 = vmatpush2.xpose.msra.mxu0 0.0
    %777 = vmatprep.subr.mxu0 0.0
    %778 = vmatpush2.xpose.msra.mxu0 0.0
    %779 = vmatprep.subr.mxu0 0.0
    %780 = vmatpush2.xpose.msra.mxu0 0.0
    %781 = vmatprep.subr.mxu0 0.0
    %782 = vmatpush2.xpose.msra.mxu0 0.0
    %783 = vmatprep.subr.mxu0 0.0
    %784 = vmatpush2.xpose.msra.mxu0 0.0
    %785 = vmatprep.subr.mxu0 0.0
    %786 = vmatpush2.xpose.msra.mxu0 0.0
    %787 = vmatprep.subr.mxu0 0.0
    %788 = vmatpush2.xpose.msra.mxu0 0.0
    %789 = vmatprep.subr.mxu0 0.0
    %790 = vmatpush2.xpose.msra.mxu0 0.0
    %791 = vmatprep.mubr.f32.mxu0 0.0
    %792 = vmatmul.mubr.f32.gmra.mxu0 %v723
    %v793 = vpop.f32.mrf.mxu0
    %v794 = vadd.f32 %v185, %v793
    %v795 = vpop.f32.mrf.mxu0
    %796 = vdwg.mxu0
    %v797 = vsel %vm190, %v262, -inf
    %798 = vmax.xlane.f32.xlu0 %v797
    %v799 = vpop.xlane.xlu0 %798
    %v800 = vsel %vm190, %v338, -inf
    %801 = vmax.xlane.f32.xlu0 %v800
    %v802 = vpop.xlane.xlu0 %801
    %v803 = vsel %vm190, %v414, -inf
    %804 = vmax.xlane.f32.xlu0 %v803
    %v805 = vpop.xlane.xlu0 %804
    %v806 = vsel %vm190, %v490, -inf
    %807 = vmax.xlane.f32.xlu0 %v806
    %v808 = vpop.xlane.xlu0 %807
    %v809 = vsel %vm190, %v566, -inf
    %810 = vmax.xlane.f32.xlu0 %v809
    %v811 = vpop.xlane.xlu0 %810
    %v812 = vsel %vm190, %v642, -inf
    %813 = vmax.xlane.f32.xlu0 %v812
    %v814 = vpop.xlane.xlu0 %813
    %v815 = vsel %vm190, %v718, -inf
    %816 = vmax.xlane.f32.xlu0 %v815
    %v817 = vpop.xlane.xlu0 %816
    %v818 = vsel %vm190, %v794, -inf
    %819 = vmax.xlane.f32.xlu0 %v818
    %v820 = vpop.xlane.xlu0 %819
    %v821 = vsub.f32 %v262, %v799
    %v822 = vsub.f32 %v338, %v802
    %v823 = vsub.f32 %v414, %v805
    %v824 = vsub.f32 %v490, %v808
    %v825 = vsub.f32 %v566, %v811
    %v826 = vsub.f32 %v642, %v814
    %v827 = vsub.f32 %v718, %v817
    %v828 = vsub.f32 %v794, %v820
    %v829 = vmul.f32 %v821, 1.442695
    %v830 = vpow.pop %v829
    %v831 = vmul.f32 %v822, 1.442695
    %v832 = vpow.pop %v831
    %v833 = vmul.f32 %v823, 1.442695
    %v834 = vpow.pop %v833
    %v835 = vmul.f32 %v824, 1.442695
    %v836 = vpow.pop %v835
    %v837 = vmul.f32 %v825, 1.442695
    %v838 = vpow.pop %v837
    %v839 = vmul.f32 %v826, 1.442695
    %v840 = vpow.pop %v839
    %v841 = vmul.f32 %v827, 1.442695
    %v842 = vpow.pop %v841
    %v843 = vmul.f32 %v828, 1.442695
    %v844 = vpow.pop %v843
    %v845 = vsel %vm190, %v830, 0.0
    %846 = vadd.xlane.f32.xlu0 %v845
    %v847 = vpop.xlane.xlu0 %846
    %v848 = vsel %vm190, %v832, 0.0
    %849 = vadd.xlane.f32.xlu0 %v848
    %v850 = vpop.xlane.xlu0 %849
    %v851 = vsel %vm190, %v834, 0.0
    %852 = vadd.xlane.f32.xlu0 %v851
    %v853 = vpop.xlane.xlu0 %852
    %v854 = vsel %vm190, %v836, 0.0
    %855 = vadd.xlane.f32.xlu0 %v854
    %v856 = vpop.xlane.xlu0 %855
    %v857 = vsel %vm190, %v838, 0.0
    %858 = vadd.xlane.f32.xlu0 %v857
    %v859 = vpop.xlane.xlu0 %858
    %v860 = vsel %vm190, %v840, 0.0
    %861 = vadd.xlane.f32.xlu0 %v860
    %v862 = vpop.xlane.xlu0 %861
    %v863 = vsel %vm190, %v842, 0.0
    %864 = vadd.xlane.f32.xlu0 %v863
    %v865 = vpop.xlane.xlu0 %864
    %v866 = vsel %vm190, %v844, 0.0
    %867 = vadd.xlane.f32.xlu0 %v866
    %v868 = vpop.xlane.xlu0 %867
    %v869 = vrcp.pop %v847
    %v870 = vrcp.pop %v850
    %v871 = vrcp.pop %v853
    %v872 = vrcp.pop %v856
    %v873 = vrcp.pop %v859
    %v874 = vrcp.pop %v862
    %v875 = vrcp.pop %v865
    %v876 = vrcp.pop %v868
    %v877 = vmul.f32 %v830, %v869
    %v878 = vmul.f32 %v832, %v870
    %v879 = vmul.f32 %v834, %v871
    %v880 = vmul.f32 %v836, %v872
    %v881 = vmul.f32 %v838, %v873
    %v882 = vmul.f32 %v840, %v874
    %v883 = vmul.f32 %v842, %v875
    %v884 = vmul.f32 %v844, %v876
    %885 = vrot.lane.b32.xlu0 %v152, 64
    %v886 = vpop.permute.xlu0 %885
    %v889 = vsel %vm190, %v877, 0
    %891 = vmatprep.subr.mxu0 0.0
    %892 = vmatpush1.msra.mxu0 0.0
    %893 = vmatprep.subr.mxu0 0.0
    %894 = vmatpush1.msra.mxu0 0.0
    %895 = vmatprep.subr.mxu0 0.0
    %896 = vmatpush1.msra.mxu0 0.0
    %897 = vmatprep.subr.mxu0 0.0
    %898 = vmatpush1.msra.mxu0 0.0
    %899 = vmatprep.subr.mxu0 0.0
    %900 = vmatpush1.msra.mxu0 0.0
    %901 = vmatprep.subr.mxu0 0.0
    %902 = vmatpush1.msra.mxu0 0.0
    %903 = vmatprep.subr.mxu0 0.0
    %904 = vmatpush1.msra.mxu0 0.0
    %905 = vmatprep.subr.mxu0 0.0
    %906 = vmatpush1.msra.mxu0 0.0
    %907 = vmatprep.subr.mxu0 0.0
    %908 = vmatpush1.msra.mxu0 0.0
    %909 = vmatprep.subr.mxu0 0.0
    %910 = vmatpush1.msra.mxu0 0.0
    %911 = vmatprep.subr.mxu0 0.0
    %912 = vmatpush1.msra.mxu0 0.0
    %913 = vmatprep.subr.mxu0 0.0
    %914 = vmatpush1.msra.mxu0 0.0
    %915 = vmatprep.subr.mxu0 0.0
    %916 = vmatpush1.msra.mxu0 0.0
    %917 = vmatprep.subr.mxu0 0.0
    %918 = vmatpush1.msra.mxu0 0.0
    %919 = vmatprep.subr.mxu0 0.0
    %920 = vmatpush1.msra.mxu0 0.0
    %921 = vmatprep.subr.mxu0 0.0
    %922 = vmatpush1.msra.mxu0 %v886
    %923 = vmatprep.subr.mxu0 0.0
    %924 = vmatpush2.msra.mxu0 0.0
    %925 = vmatprep.subr.mxu0 0.0
    %926 = vmatpush2.msra.mxu0 0.0
    %927 = vmatprep.subr.mxu0 0.0
    %928 = vmatpush2.msra.mxu0 0.0
    %929 = vmatprep.subr.mxu0 0.0
    %930 = vmatpush2.msra.mxu0 0.0
    %931 = vmatprep.subr.mxu0 0.0
    %932 = vmatpush2.msra.mxu0 0.0
    %933 = vmatprep.subr.mxu0 0.0
    %934 = vmatpush2.msra.mxu0 0.0
    %935 = vmatprep.subr.mxu0 0.0
    %936 = vmatpush2.msra.mxu0 0.0
    %937 = vmatprep.subr.mxu0 0.0
    %938 = vmatpush2.msra.mxu0 0.0
    %939 = vmatprep.subr.mxu0 0.0
    %940 = vmatpush2.msra.mxu0 0.0
    %941 = vmatprep.subr.mxu0 0.0
    %942 = vmatpush2.msra.mxu0 0.0
    %943 = vmatprep.subr.mxu0 0.0
    %944 = vmatpush2.msra.mxu0 0.0
    %945 = vmatprep.subr.mxu0 0.0
    %946 = vmatpush2.msra.mxu0 0.0
    %947 = vmatprep.subr.mxu0 0.0
    %948 = vmatpush2.msra.mxu0 0.0
    %949 = vmatprep.subr.mxu0 0.0
    %950 = vmatpush2.msra.mxu0 0.0
    %951 = vmatprep.subr.mxu0 0.0
    %952 = vmatpush2.msra.mxu0 0.0
    %953 = vmatprep.subr.mxu0 0.0
    %954 = vmatpush2.msra.mxu0 0.0
    %955 = vmatprep.mubr.f32.mxu0 0.0
    %956 = vmatmul.mubr.f32.gmra.mxu0 %v889
    %v957 = vpop.f32.mrf.mxu0
    %v958 = vadd.f32 0.0, %v957
    %v959 = vpop.f32.mrf.mxu0
    %960 = vdwg.mxu0
    %961 = vrot.lane.b32.xlu0 %v157, 64
    %v962 = vpop.permute.xlu0 %961
    %v965 = vsel %vm190, %v878, 0
    %967 = vmatprep.subr.mxu0 0.0
    %968 = vmatpush1.msra.mxu0 0.0
    %969 = vmatprep.subr.mxu0 0.0
    %970 = vmatpush1.msra.mxu0 0.0
    %971 = vmatprep.subr.mxu0 0.0
    %972 = vmatpush1.msra.mxu0 0.0
    %973 = vmatprep.subr.mxu0 0.0
    %974 = vmatpush1.msra.mxu0 0.0
    %975 = vmatprep.subr.mxu0 0.0
    %976 = vmatpush1.msra.mxu0 0.0
    %977 = vmatprep.subr.mxu0 0.0
    %978 = vmatpush1.msra.mxu0 0.0
    %979 = vmatprep.subr.mxu0 0.0
    %980 = vmatpush1.msra.mxu0 0.0
    %981 = vmatprep.subr.mxu0 0.0
    %982 = vmatpush1.msra.mxu0 0.0
    %983 = vmatprep.subr.mxu0 0.0
    %984 = vmatpush1.msra.mxu0 0.0
    %985 = vmatprep.subr.mxu0 0.0
    %986 = vmatpush1.msra.mxu0 0.0
    %987 = vmatprep.subr.mxu0 0.0
    %988 = vmatpush1.msra.mxu0 0.0
    %989 = vmatprep.subr.mxu0 0.0
    %990 = vmatpush1.msra.mxu0 0.0
    %991 = vmatprep.subr.mxu0 0.0
    %992 = vmatpush1.msra.mxu0 0.0
    %993 = vmatprep.subr.mxu0 0.0
    %994 = vmatpush1.msra.mxu0 0.0
    %995 = vmatprep.subr.mxu0 0.0
    %996 = vmatpush1.msra.mxu0 0.0
    %997 = vmatprep.subr.mxu0 0.0
    %998 = vmatpush1.msra.mxu0 %v962
    %999 = vmatprep.subr.mxu0 0.0
    %1000 = vmatpush2.msra.mxu0 0.0
    %1001 = vmatprep.subr.mxu0 0.0
    %1002 = vmatpush2.msra.mxu0 0.0
    %1003 = vmatprep.subr.mxu0 0.0
    %1004 = vmatpush2.msra.mxu0 0.0
    %1005 = vmatprep.subr.mxu0 0.0
    %1006 = vmatpush2.msra.mxu0 0.0
    %1007 = vmatprep.subr.mxu0 0.0
    %1008 = vmatpush2.msra.mxu0 0.0
    %1009 = vmatprep.subr.mxu0 0.0
    %1010 = vmatpush2.msra.mxu0 0.0
    %1011 = vmatprep.subr.mxu0 0.0
    %1012 = vmatpush2.msra.mxu0 0.0
    %1013 = vmatprep.subr.mxu0 0.0
    %1014 = vmatpush2.msra.mxu0 0.0
    %1015 = vmatprep.subr.mxu0 0.0
    %1016 = vmatpush2.msra.mxu0 0.0
    %1017 = vmatprep.subr.mxu0 0.0
    %1018 = vmatpush2.msra.mxu0 0.0
    %1019 = vmatprep.subr.mxu0 0.0
    %1020 = vmatpush2.msra.mxu0 0.0
    %1021 = vmatprep.subr.mxu0 0.0
    %1022 = vmatpush2.msra.mxu0 0.0
    %1023 = vmatprep.subr.mxu0 0.0
    %1024 = vmatpush2.msra.mxu0 0.0
    %1025 = vmatprep.subr.mxu0 0.0
    %1026 = vmatpush2.msra.mxu0 0.0
    %1027 = vmatprep.subr.mxu0 0.0
    %1028 = vmatpush2.msra.mxu0 0.0
    %1029 = vmatprep.subr.mxu0 0.0
    %1030 = vmatpush2.msra.mxu0 0.0
    %1031 = vmatprep.mubr.f32.mxu0 0.0
    %1032 = vmatmul.mubr.f32.gmra.mxu0 %v965
    %v1033 = vpop.f32.mrf.mxu0
    %v1034 = vadd.f32 0.0, %v1033
    %v1035 = vpop.f32.mrf.mxu0
    %1036 = vdwg.mxu0
    %1037 = vrot.lane.b32.xlu0 %v163, 64
    %v1038 = vpop.permute.xlu0 %1037
    %v1041 = vsel %vm190, %v879, 0
    %1043 = vmatprep.subr.mxu0 0.0
    %1044 = vmatpush1.msra.mxu0 0.0
    %1045 = vmatprep.subr.mxu0 0.0
    %1046 = vmatpush1.msra.mxu0 0.0
    %1047 = vmatprep.subr.mxu0 0.0
    %1048 = vmatpush1.msra.mxu0 0.0
    %1049 = vmatprep.subr.mxu0 0.0
    %1050 = vmatpush1.msra.mxu0 0.0
    %1051 = vmatprep.subr.mxu0 0.0
    %1052 = vmatpush1.msra.mxu0 0.0
    %1053 = vmatprep.subr.mxu0 0.0
    %1054 = vmatpush1.msra.mxu0 0.0
    %1055 = vmatprep.subr.mxu0 0.0
    %1056 = vmatpush1.msra.mxu0 0.0
    %1057 = vmatprep.subr.mxu0 0.0
    %1058 = vmatpush1.msra.mxu0 0.0
    %1059 = vmatprep.subr.mxu0 0.0
    %1060 = vmatpush1.msra.mxu0 0.0
    %1061 = vmatprep.subr.mxu0 0.0
    %1062 = vmatpush1.msra.mxu0 0.0
    %1063 = vmatprep.subr.mxu0 0.0
    %1064 = vmatpush1.msra.mxu0 0.0
    %1065 = vmatprep.subr.mxu0 0.0
    %1066 = vmatpush1.msra.mxu0 0.0
    %1067 = vmatprep.subr.mxu0 0.0
    %1068 = vmatpush1.msra.mxu0 0.0
    %1069 = vmatprep.subr.mxu0 0.0
    %1070 = vmatpush1.msra.mxu0 0.0
    %1071 = vmatprep.subr.mxu0 0.0
    %1072 = vmatpush1.msra.mxu0 0.0
    %1073 = vmatprep.subr.mxu0 0.0
    %1074 = vmatpush1.msra.mxu0 %v1038
    %1075 = vmatprep.subr.mxu0 0.0
    %1076 = vmatpush2.msra.mxu0 0.0
    %1077 = vmatprep.subr.mxu0 0.0
    %1078 = vmatpush2.msra.mxu0 0.0
    %1079 = vmatprep.subr.mxu0 0.0
    %1080 = vmatpush2.msra.mxu0 0.0
    %1081 = vmatprep.subr.mxu0 0.0
    %1082 = vmatpush2.msra.mxu0 0.0
    %1083 = vmatprep.subr.mxu0 0.0
    %1084 = vmatpush2.msra.mxu0 0.0
    %1085 = vmatprep.subr.mxu0 0.0
    %1086 = vmatpush2.msra.mxu0 0.0
    %1087 = vmatprep.subr.mxu0 0.0
    %1088 = vmatpush2.msra.mxu0 0.0
    %1089 = vmatprep.subr.mxu0 0.0
    %1090 = vmatpush2.msra.mxu0 0.0
    %1091 = vmatprep.subr.mxu0 0.0
    %1092 = vmatpush2.msra.mxu0 0.0
    %1093 = vmatprep.subr.mxu0 0.0
    %1094 = vmatpush2.msra.mxu0 0.0
    %1095 = vmatprep.subr.mxu0 0.0
    %1096 = vmatpush2.msra.mxu0 0.0
    %1097 = vmatprep.subr.mxu0 0.0
    %1098 = vmatpush2.msra.mxu0 0.0
    %1099 = vmatprep.subr.mxu0 0.0
    %1100 = vmatpush2.msra.mxu0 0.0
    %1101 = vmatprep.subr.mxu0 0.0
    %1102 = vmatpush2.msra.mxu0 0.0
    %1103 = vmatprep.subr.mxu0 0.0
    %1104 = vmatpush2.msra.mxu0 0.0
    %1105 = vmatprep.subr.mxu0 0.0
    %1106 = vmatpush2.msra.mxu0 0.0
    %1107 = vmatprep.mubr.f32.mxu0 0.0
    %1108 = vmatmul.mubr.f32.gmra.mxu0 %v1041
    %v1109 = vpop.f32.mrf.mxu0
    %v1110 = vadd.f32 0.0, %v1109
    %v1111 = vpop.f32.mrf.mxu0
    %1112 = vdwg.mxu0
    %1113 = vrot.lane.b32.xlu0 %v165, 64
    %v1114 = vpop.permute.xlu0 %1113
    %v1117 = vsel %vm190, %v880, 0
    %1119 = vmatprep.subr.mxu0 0.0
    %1120 = vmatpush1.msra.mxu0 0.0
    %1121 = vmatprep.subr.mxu0 0.0
    %1122 = vmatpush1.msra.mxu0 0.0
    %1123 = vmatprep.subr.mxu0 0.0
    %1124 = vmatpush1.msra.mxu0 0.0
    %1125 = vmatprep.subr.mxu0 0.0
    %1126 = vmatpush1.msra.mxu0 0.0
    %1127 = vmatprep.subr.mxu0 0.0
    %1128 = vmatpush1.msra.mxu0 0.0
    %1129 = vmatprep.subr.mxu0 0.0
    %1130 = vmatpush1.msra.mxu0 0.0
    %1131 = vmatprep.subr.mxu0 0.0
    %1132 = vmatpush1.msra.mxu0 0.0
    %1133 = vmatprep.subr.mxu0 0.0
    %1134 = vmatpush1.msra.mxu0 0.0
    %1135 = vmatprep.subr.mxu0 0.0
    %1136 = vmatpush1.msra.mxu0 0.0
    %1137 = vmatprep.subr.mxu0 0.0
    %1138 = vmatpush1.msra.mxu0 0.0
    %1139 = vmatprep.subr.mxu0 0.0
    %1140 = vmatpush1.msra.mxu0 0.0
    %1141 = vmatprep.subr.mxu0 0.0
    %1142 = vmatpush1.msra.mxu0 0.0
    %1143 = vmatprep.subr.mxu0 0.0
    %1144 = vmatpush1.msra.mxu0 0.0
    %1145 = vmatprep.subr.mxu0 0.0
    %1146 = vmatpush1.msra.mxu0 0.0
    %1147 = vmatprep.subr.mxu0 0.0
    %1148 = vmatpush1.msra.mxu0 0.0
    %1149 = vmatprep.subr.mxu0 0.0
    %1150 = vmatpush1.msra.mxu0 %v1114
    %1151 = vmatprep.subr.mxu0 0.0
    %1152 = vmatpush2.msra.mxu0 0.0
    %1153 = vmatprep.subr.mxu0 0.0
    %1154 = vmatpush2.msra.mxu0 0.0
    %1155 = vmatprep.subr.mxu0 0.0
    %1156 = vmatpush2.msra.mxu0 0.0
    %1157 = vmatprep.subr.mxu0 0.0
    %1158 = vmatpush2.msra.mxu0 0.0
    %1159 = vmatprep.subr.mxu0 0.0
    %1160 = vmatpush2.msra.mxu0 0.0
    %1161 = vmatprep.subr.mxu0 0.0
    %1162 = vmatpush2.msra.mxu0 0.0
    %1163 = vmatprep.subr.mxu0 0.0
    %1164 = vmatpush2.msra.mxu0 0.0
    %1165 = vmatprep.subr.mxu0 0.0
    %1166 = vmatpush2.msra.mxu0 0.0
    %1167 = vmatprep.subr.mxu0 0.0
    %1168 = vmatpush2.msra.mxu0 0.0
    %1169 = vmatprep.subr.mxu0 0.0
    %1170 = vmatpush2.msra.mxu0 0.0
    %1171 = vmatprep.subr.mxu0 0.0
    %1172 = vmatpush2.msra.mxu0 0.0
    %1173 = vmatprep.subr.mxu0 0.0
    %1174 = vmatpush2.msra.mxu0 0.0
    %1175 = vmatprep.subr.mxu0 0.0
    %1176 = vmatpush2.msra.mxu0 0.0
    %1177 = vmatprep.subr.mxu0 0.0
    %1178 = vmatpush2.msra.mxu0 0.0
    %1179 = vmatprep.subr.mxu0 0.0
    %1180 = vmatpush2.msra.mxu0 0.0
    %1181 = vmatprep.subr.mxu0 0.0
    %1182 = vmatpush2.msra.mxu0 0.0
    %1183 = vmatprep.mubr.f32.mxu0 0.0
    %1184 = vmatmul.mubr.f32.gmra.mxu0 %v1117
    %v1185 = vpop.f32.mrf.mxu0
    %v1186 = vadd.f32 0.0, %v1185
    %v1187 = vpop.f32.mrf.mxu0
    %1188 = vdwg.mxu0
    %1189 = vrot.lane.b32.xlu0 %v167, 64
    %v1190 = vpop.permute.xlu0 %1189
    %v1193 = vsel %vm190, %v881, 0
    %1195 = vmatprep.subr.mxu0 0.0
    %1196 = vmatpush1.msra.mxu0 0.0
    %1197 = vmatprep.subr.mxu0 0.0
    %1198 = vmatpush1.msra.mxu0 0.0
    %1199 = vmatprep.subr.mxu0 0.0
    %1200 = vmatpush1.msra.mxu0 0.0
    %1201 = vmatprep.subr.mxu0 0.0
    %1202 = vmatpush1.msra.mxu0 0.0
    %1203 = vmatprep.subr.mxu0 0.0
    %1204 = vmatpush1.msra.mxu0 0.0
    %1205 = vmatprep.subr.mxu0 0.0
    %1206 = vmatpush1.msra.mxu0 0.0
    %1207 = vmatprep.subr.mxu0 0.0
    %1208 = vmatpush1.msra.mxu0 0.0
    %1209 = vmatprep.subr.mxu0 0.0
    %1210 = vmatpush1.msra.mxu0 0.0
    %1211 = vmatprep.subr.mxu0 0.0
    %1212 = vmatpush1.msra.mxu0 0.0
    %1213 = vmatprep.subr.mxu0 0.0
    %1214 = vmatpush1.msra.mxu0 0.0
    %1215 = vmatprep.subr.mxu0 0.0
    %1216 = vmatpush1.msra.mxu0 0.0
    %1217 = vmatprep.subr.mxu0 0.0
    %1218 = vmatpush1.msra.mxu0 0.0
    %1219 = vmatprep.subr.mxu0 0.0
    %1220 = vmatpush1.msra.mxu0 0.0
    %1221 = vmatprep.subr.mxu0 0.0
    %1222 = vmatpush1.msra.mxu0 0.0
    %1223 = vmatprep.subr.mxu0 0.0
    %1224 = vmatpush1.msra.mxu0 0.0
    %1225 = vmatprep.subr.mxu0 0.0
    %1226 = vmatpush1.msra.mxu0 %v1190
    %1227 = vmatprep.subr.mxu0 0.0
    %1228 = vmatpush2.msra.mxu0 0.0
    %1229 = vmatprep.subr.mxu0 0.0
    %1230 = vmatpush2.msra.mxu0 0.0
    %1231 = vmatprep.subr.mxu0 0.0
    %1232 = vmatpush2.msra.mxu0 0.0
    %1233 = vmatprep.subr.mxu0 0.0
    %1234 = vmatpush2.msra.mxu0 0.0
    %1235 = vmatprep.subr.mxu0 0.0
    %1236 = vmatpush2.msra.mxu0 0.0
    %1237 = vmatprep.subr.mxu0 0.0
    %1238 = vmatpush2.msra.mxu0 0.0
    %1239 = vmatprep.subr.mxu0 0.0
    %1240 = vmatpush2.msra.mxu0 0.0
    %1241 = vmatprep.subr.mxu0 0.0
    %1242 = vmatpush2.msra.mxu0 0.0
    %1243 = vmatprep.subr.mxu0 0.0
    %1244 = vmatpush2.msra.mxu0 0.0
    %1245 = vmatprep.subr.mxu0 0.0
    %1246 = vmatpush2.msra.mxu0 0.0
    %1247 = vmatprep.subr.mxu0 0.0
    %1248 = vmatpush2.msra.mxu0 0.0
    %1249 = vmatprep.subr.mxu0 0.0
    %1250 = vmatpush2.msra.mxu0 0.0
    %1251 = vmatprep.subr.mxu0 0.0
    %1252 = vmatpush2.msra.mxu0 0.0
    %1253 = vmatprep.subr.mxu0 0.0
    %1254 = vmatpush2.msra.mxu0 0.0
    %1255 = vmatprep.subr.mxu0 0.0
    %1256 = vmatpush2.msra.mxu0 0.0
    %1257 = vmatprep.subr.mxu0 0.0
    %1258 = vmatpush2.msra.mxu0 0.0
    %1259 = vmatprep.mubr.f32.mxu0 0.0
    %1260 = vmatmul.mubr.f32.gmra.mxu0 %v1193
    %v1261 = vpop.f32.mrf.mxu0
    %v1262 = vadd.f32 0.0, %v1261
    %v1263 = vpop.f32.mrf.mxu0
    %1264 = vdwg.mxu0
    %1265 = vrot.lane.b32.xlu0 %v169, 64
    %v1266 = vpop.permute.xlu0 %1265
    %v1269 = vsel %vm190, %v882, 0
    %1271 = vmatprep.subr.mxu0 0.0
    %1272 = vmatpush1.msra.mxu0 0.0
    %1273 = vmatprep.subr.mxu0 0.0
    %1274 = vmatpush1.msra.mxu0 0.0
    %1275 = vmatprep.subr.mxu0 0.0
    %1276 = vmatpush1.msra.mxu0 0.0
    %1277 = vmatprep.subr.mxu0 0.0
    %1278 = vmatpush1.msra.mxu0 0.0
    %1279 = vmatprep.subr.mxu0 0.0
    %1280 = vmatpush1.msra.mxu0 0.0
    %1281 = vmatprep.subr.mxu0 0.0
    %1282 = vmatpush1.msra.mxu0 0.0
    %1283 = vmatprep.subr.mxu0 0.0
    %1284 = vmatpush1.msra.mxu0 0.0
    %1285 = vmatprep.subr.mxu0 0.0
    %1286 = vmatpush1.msra.mxu0 0.0
    %1287 = vmatprep.subr.mxu0 0.0
    %1288 = vmatpush1.msra.mxu0 0.0
    %1289 = vmatprep.subr.mxu0 0.0
    %1290 = vmatpush1.msra.mxu0 0.0
    %1291 = vmatprep.subr.mxu0 0.0
    %1292 = vmatpush1.msra.mxu0 0.0
    %1293 = vmatprep.subr.mxu0 0.0
    %1294 = vmatpush1.msra.mxu0 0.0
    %1295 = vmatprep.subr.mxu0 0.0
    %1296 = vmatpush1.msra.mxu0 0.0
    %1297 = vmatprep.subr.mxu0 0.0
    %1298 = vmatpush1.msra.mxu0 0.0
    %1299 = vmatprep.subr.mxu0 0.0
    %1300 = vmatpush1.msra.mxu0 0.0
    %1301 = vmatprep.subr.mxu0 0.0
    %1302 = vmatpush1.msra.mxu0 %v1266
    %1303 = vmatprep.subr.mxu0 0.0
    %1304 = vmatpush2.msra.mxu0 0.0
    %1305 = vmatprep.subr.mxu0 0.0
    %1306 = vmatpush2.msra.mxu0 0.0
    %1307 = vmatprep.subr.mxu0 0.0
    %1308 = vmatpush2.msra.mxu0 0.0
    %1309 = vmatprep.subr.mxu0 0.0
    %1310 = vmatpush2.msra.mxu0 0.0
    %1311 = vmatprep.subr.mxu0 0.0
    %1312 = vmatpush2.msra.mxu0 0.0
    %1313 = vmatprep.subr.mxu0 0.0
    %1314 = vmatpush2.msra.mxu0 0.0
    %1315 = vmatprep.subr.mxu0 0.0
    %1316 = vmatpush2.msra.mxu0 0.0
    %1317 = vmatprep.subr.mxu0 0.0
    %1318 = vmatpush2.msra.mxu0 0.0
    %1319 = vmatprep.subr.mxu0 0.0
    %1320 = vmatpush2.msra.mxu0 0.0
    %1321 = vmatprep.subr.mxu0 0.0
    %1322 = vmatpush2.msra.mxu0 0.0
    %1323 = vmatprep.subr.mxu0 0.0
    %1324 = vmatpush2.msra.mxu0 0.0
    %1325 = vmatprep.subr.mxu0 0.0
    %1326 = vmatpush2.msra.mxu0 0.0
    %1327 = vmatprep.subr.mxu0 0.0
    %1328 = vmatpush2.msra.mxu0 0.0
    %1329 = vmatprep.subr.mxu0 0.0
    %1330 = vmatpush2.msra.mxu0 0.0
    %1331 = vmatprep.subr.mxu0 0.0
    %1332 = vmatpush2.msra.mxu0 0.0
    %1333 = vmatprep.subr.mxu0 0.0
    %1334 = vmatpush2.msra.mxu0 0.0
    %1335 = vmatprep.mubr.f32.mxu0 0.0
    %1336 = vmatmul.mubr.f32.gmra.mxu0 %v1269
    %v1337 = vpop.f32.mrf.mxu0
    %v1338 = vadd.f32 0.0, %v1337
    %v1339 = vpop.f32.mrf.mxu0
    %1340 = vdwg.mxu0
    %1341 = vrot.lane.b32.xlu0 %v171, 64
    %v1342 = vpop.permute.xlu0 %1341
    %v1345 = vsel %vm190, %v883, 0
    %1347 = vmatprep.subr.mxu0 0.0
    %1348 = vmatpush1.msra.mxu0 0.0
    %1349 = vmatprep.subr.mxu0 0.0
    %1350 = vmatpush1.msra.mxu0 0.0
    %1351 = vmatprep.subr.mxu0 0.0
    %1352 = vmatpush1.msra.mxu0 0.0
    %1353 = vmatprep.subr.mxu0 0.0
    %1354 = vmatpush1.msra.mxu0 0.0
    %1355 = vmatprep.subr.mxu0 0.0
    %1356 = vmatpush1.msra.mxu0 0.0
    %1357 = vmatprep.subr.mxu0 0.0
    %1358 = vmatpush1.msra.mxu0 0.0
    %1359 = vmatprep.subr.mxu0 0.0
    %1360 = vmatpush1.msra.mxu0 0.0
    %1361 = vmatprep.subr.mxu0 0.0
    %1362 = vmatpush1.msra.mxu0 0.0
    %1363 = vmatprep.subr.mxu0 0.0
    %1364 = vmatpush1.msra.mxu0 0.0
    %1365 = vmatprep.subr.mxu0 0.0
    %1366 = vmatpush1.msra.mxu0 0.0
    %1367 = vmatprep.subr.mxu0 0.0
    %1368 = vmatpush1.msra.mxu0 0.0
    %1369 = vmatprep.subr.mxu0 0.0
    %1370 = vmatpush1.msra.mxu0 0.0
    %1371 = vmatprep.subr.mxu0 0.0
    %1372 = vmatpush1.msra.mxu0 0.0
    %1373 = vmatprep.subr.mxu0 0.0
    %1374 = vmatpush1.msra.mxu0 0.0
    %1375 = vmatprep.subr.mxu0 0.0
    %1376 = vmatpush1.msra.mxu0 0.0
    %1377 = vmatprep.subr.mxu0 0.0
    %1378 = vmatpush1.msra.mxu0 %v1342
    %1379 = vmatprep.subr.mxu0 0.0
    %1380 = vmatpush2.msra.mxu0 0.0
    %1381 = vmatprep.subr.mxu0 0.0
    %1382 = vmatpush2.msra.mxu0 0.0
    %1383 = vmatprep.subr.mxu0 0.0
    %1384 = vmatpush2.msra.mxu0 0.0
    %1385 = vmatprep.subr.mxu0 0.0
    %1386 = vmatpush2.msra.mxu0 0.0
    %1387 = vmatprep.subr.mxu0 0.0
    %1388 = vmatpush2.msra.mxu0 0.0
    %1389 = vmatprep.subr.mxu0 0.0
    %1390 = vmatpush2.msra.mxu0 0.0
    %1391 = vmatprep.subr.mxu0 0.0
    %1392 = vmatpush2.msra.mxu0 0.0
    %1393 = vmatprep.subr.mxu0 0.0
    %1394 = vmatpush2.msra.mxu0 0.0
    %1395 = vmatprep.subr.mxu0 0.0
    %1396 = vmatpush2.msra.mxu0 0.0
    %1397 = vmatprep.subr.mxu0 0.0
    %1398 = vmatpush2.msra.mxu0 0.0
    %1399 = vmatprep.subr.mxu0 0.0
    %1400 = vmatpush2.msra.mxu0 0.0
    %1401 = vmatprep.subr.mxu0 0.0
    %1402 = vmatpush2.msra.mxu0 0.0
    %1403 = vmatprep.subr.mxu0 0.0
    %1404 = vmatpush2.msra.mxu0 0.0
    %1405 = vmatprep.subr.mxu0 0.0
    %1406 = vmatpush2.msra.mxu0 0.0
    %1407 = vmatprep.subr.mxu0 0.0
    %1408 = vmatpush2.msra.mxu0 0.0
    %1409 = vmatprep.subr.mxu0 0.0
    %1410 = vmatpush2.msra.mxu0 0.0
    %1411 = vmatprep.mubr.f32.mxu0 0.0
    %1412 = vmatmul.mubr.f32.gmra.mxu0 %v1345
    %v1413 = vpop.f32.mrf.mxu0
    %v1414 = vadd.f32 0.0, %v1413
    %v1415 = vpop.f32.mrf.mxu0
    %1416 = vdwg.mxu0
    %1417 = vrot.lane.b32.xlu0 %v173, 64
    %v1418 = vpop.permute.xlu0 %1417
    %v1421 = vsel %vm190, %v884, 0
    %1423 = vmatprep.subr.mxu0 0.0
    %1424 = vmatpush1.msra.mxu0 0.0
    %1425 = vmatprep.subr.mxu0 0.0
    %1426 = vmatpush1.msra.mxu0 0.0
    %1427 = vmatprep.subr.mxu0 0.0
    %1428 = vmatpush1.msra.mxu0 0.0
    %1429 = vmatprep.subr.mxu0 0.0
    %1430 = vmatpush1.msra.mxu0 0.0
    %1431 = vmatprep.subr.mxu0 0.0
    %1432 = vmatpush1.msra.mxu0 0.0
    %1433 = vmatprep.subr.mxu0 0.0
    %1434 = vmatpush1.msra.mxu0 0.0
    %1435 = vmatprep.subr.mxu0 0.0
    %1436 = vmatpush1.msra.mxu0 0.0
    %1437 = vmatprep.subr.mxu0 0.0
    %1438 = vmatpush1.msra.mxu0 0.0
    %1439 = vmatprep.subr.mxu0 0.0
    %1440 = vmatpush1.msra.mxu0 0.0
    %1441 = vmatprep.subr.mxu0 0.0
    %1442 = vmatpush1.msra.mxu0 0.0
    %1443 = vmatprep.subr.mxu0 0.0
    %1444 = vmatpush1.msra.mxu0 0.0
    %1445 = vmatprep.subr.mxu0 0.0
    %1446 = vmatpush1.msra.mxu0 0.0
    %1447 = vmatprep.subr.mxu0 0.0
    %1448 = vmatpush1.msra.mxu0 0.0
    %1449 = vmatprep.subr.mxu0 0.0
    %1450 = vmatpush1.msra.mxu0 0.0
    %1451 = vmatprep.subr.mxu0 0.0
    %1452 = vmatpush1.msra.mxu0 0.0
    %1453 = vmatprep.subr.mxu0 0.0
    %1454 = vmatpush1.msra.mxu0 %v1418
    %1455 = vmatprep.subr.mxu0 0.0
    %1456 = vmatpush2.msra.mxu0 0.0
    %1457 = vmatprep.subr.mxu0 0.0
    %1458 = vmatpush2.msra.mxu0 0.0
    %1459 = vmatprep.subr.mxu0 0.0
    %1460 = vmatpush2.msra.mxu0 0.0
    %1461 = vmatprep.subr.mxu0 0.0
    %1462 = vmatpush2.msra.mxu0 0.0
    %1463 = vmatprep.subr.mxu0 0.0
    %1464 = vmatpush2.msra.mxu0 0.0
    %1465 = vmatprep.subr.mxu0 0.0
    %1466 = vmatpush2.msra.mxu0 0.0
    %1467 = vmatprep.subr.mxu0 0.0
    %1468 = vmatpush2.msra.mxu0 0.0
    %1469 = vmatprep.subr.mxu0 0.0
    %1470 = vmatpush2.msra.mxu0 0.0
    %1471 = vmatprep.subr.mxu0 0.0
    %1472 = vmatpush2.msra.mxu0 0.0
    %1473 = vmatprep.subr.mxu0 0.0
    %1474 = vmatpush2.msra.mxu0 0.0
    %1475 = vmatprep.subr.mxu0 0.0
    %1476 = vmatpush2.msra.mxu0 0.0
    %1477 = vmatprep.subr.mxu0 0.0
    %1478 = vmatpush2.msra.mxu0 0.0
    %1479 = vmatprep.subr.mxu0 0.0
    %1480 = vmatpush2.msra.mxu0 0.0
    %1481 = vmatprep.subr.mxu0 0.0
    %1482 = vmatpush2.msra.mxu0 0.0
    %1483 = vmatprep.subr.mxu0 0.0
    %1484 = vmatpush2.msra.mxu0 0.0
    %1485 = vmatprep.subr.mxu0 0.0
    %1486 = vmatpush2.msra.mxu0 0.0
    %1487 = vmatprep.mubr.f32.mxu0 0.0
    %1488 = vmatmul.mubr.f32.gmra.mxu0 %v1421
    %v1489 = vpop.f32.mrf.mxu0
    %v1490 = vadd.f32 0.0, %v1489
    %v1491 = vpop.f32.mrf.mxu0
    %1492 = vdwg.mxu0
    %1495 = vrot.lane.b32.xlu0 %v1110, 8
    %v1496 = vpop.permute.xlu0 %1495
    %1497 = vrot.lane.b32.xlu0 %v1186, 8
    %v1498 = vpop.permute.xlu0 %1497
    %1503 = vrot.lane.b32.xlu0 %v1262, 16
    %v1504 = vpop.permute.xlu0 %1503
    %1505 = vrot.lane.b32.xlu0 %v1338, 16
    %v1506 = vpop.permute.xlu0 %1505
    %1511 = vrot.lane.b32.xlu0 %v1414, 24
    %v1512 = vpop.permute.xlu0 %1511
    %1513 = vrot.lane.b32.xlu0 %v1490, 24
    %v1514 = vpop.permute.xlu0 %1513
    %v1517 = vsel %vm190, %v958, %v1496
    %v1518 = vsel %vm190, %v1034, %v1498
    %vm1519 = vcmask 130048
    %v1520 = vsel %vm1519, %v1517, %v1504
    %v1521 = vsel %vm1519, %v1518, %v1506
    %vm1522 = vcmask 195584
    %v1523 = vsel %vm1522, %v1520, %v1512
    %v1524 = vsel %vm1522, %v1521, %v1514
    %v1525 = vld [vmem:[#allocation7] sm:$0xff]
    %v1526 = vld [vmem:[#allocation7 + $0x8] sm:$0xff]
    %v1527 = vld [vmem:[#allocation7 + $0x10] sm:$0xff]
    %v1528 = vld [vmem:[#allocation7 + $0x18] sm:$0xff]
    %v1529 = vld [vmem:[%s5] sm:$0x1]
    %v1530 = vld [vmem:[%s5 + $0x1] sm:$0x1]
    %v1531 = vld [vmem:[%s5 + $0x2] sm:$0x1]
    %v1532 = vlaneseq
    %v1533 = vshrl.u32 %v1532, 7
    %v1534 = vsub.s32 0, %v1533
    %v1535 = vrot.slane %v1529, %v1534
    %v1537 = vsel %vm78, %v1523, 0
    %v1540 = vsel %vm78, %v1524, 0
    %1542 = vmatprep.subr.mxu0 0.0
    %1543 = vmatpush1.msra.mxu0 0.0
    %1544 = vmatprep.subr.mxu0 0.0
    %1545 = vmatpush1.msra.mxu0 0.0
    %1546 = vmatprep.subr.mxu0 0.0
    %1547 = vmatpush1.msra.mxu0 0.0
    %1548 = vmatprep.subr.mxu0 0.0
    %1549 = vmatpush1.msra.mxu0 0.0
    %1550 = vmatprep.subr.mxu0 0.0
    %1551 = vmatpush1.msra.mxu0 0.0
    %1552 = vmatprep.subr.mxu0 0.0
    %1553 = vmatpush1.msra.mxu0 0.0
    %1554 = vmatprep.subr.mxu0 0.0
    %1555 = vmatpush1.msra.mxu0 0.0
    %1556 = vmatprep.subr.mxu0 0.0
    %1557 = vmatpush1.msra.mxu0 0.0
    %1558 = vmatprep.subr.mxu0 0.0
    %1559 = vmatpush1.msra.mxu0 0.0
    %1560 = vmatprep.subr.mxu0 0.0
    %1561 = vmatpush1.msra.mxu0 0.0
    %1562 = vmatprep.subr.mxu0 0.0
    %1563 = vmatpush1.msra.mxu0 0.0
    %1564 = vmatprep.subr.mxu0 0.0
    %1565 = vmatpush1.msra.mxu0 0.0
    %1566 = vmatprep.subr.mxu0 0.0
    %1567 = vmatpush1.msra.mxu0 %v1528
    %1568 = vmatprep.subr.mxu0 0.0
    %1569 = vmatpush1.msra.mxu0 %v1527
    %1570 = vmatprep.subr.mxu0 0.0
    %1571 = vmatpush1.msra.mxu0 %v1526
    %1572 = vmatprep.subr.mxu0 0.0
    %1573 = vmatpush1.msra.mxu0 %v1525
    %1574 = vmatprep.subr.mxu0 0.0
    %1575 = vmatpush2.msra.mxu0 0.0
    %1576 = vmatprep.subr.mxu0 0.0
    %1577 = vmatpush2.msra.mxu0 0.0
    %1578 = vmatprep.subr.mxu0 0.0
    %1579 = vmatpush2.msra.mxu0 0.0
    %1580 = vmatprep.subr.mxu0 0.0
    %1581 = vmatpush2.msra.mxu0 0.0
    %1582 = vmatprep.subr.mxu0 0.0
    %1583 = vmatpush2.msra.mxu0 0.0
    %1584 = vmatprep.subr.mxu0 0.0
    %1585 = vmatpush2.msra.mxu0 0.0
    %1586 = vmatprep.subr.mxu0 0.0
    %1587 = vmatpush2.msra.mxu0 0.0
    %1588 = vmatprep.subr.mxu0 0.0
    %1589 = vmatpush2.msra.mxu0 0.0
    %1590 = vmatprep.subr.mxu0 0.0
    %1591 = vmatpush2.msra.mxu0 0.0
    %1592 = vmatprep.subr.mxu0 0.0
    %1593 = vmatpush2.msra.mxu0 0.0
    %1594 = vmatprep.subr.mxu0 0.0
    %1595 = vmatpush2.msra.mxu0 0.0
    %1596 = vmatprep.subr.mxu0 0.0
    %1597 = vmatpush2.msra.mxu0 0.0
    %1598 = vmatprep.subr.mxu0 0.0
    %1599 = vmatpush2.msra.mxu0 0.0
    %1600 = vmatprep.subr.mxu0 0.0
    %1601 = vmatpush2.msra.mxu0 0.0
    %1602 = vmatprep.subr.mxu0 0.0
    %1603 = vmatpush2.msra.mxu0 0.0
    %1604 = vmatprep.subr.mxu0 0.0
    %1605 = vmatpush2.msra.mxu0 0.0
    %1606 = vmatprep.mubr.f32.mxu0 0.0
    %1607 = vmatmul.mubr.f32.gmra.mxu0 %v1537
    %v1608 = vpop.f32.mrf.mxu0
    %v1609 = vadd.f32 %v1535, %v1608
    %v1610 = vpop.f32.mrf.mxu0
    %1611 = vmatprep.mubr.f32.mxu0 0.0
    %1612 = vmatmul.mubr.f32.gmra.mxu0 %v1540
    %v1613 = vpop.f32.mrf.mxu0
    %v1614 = vadd.f32 %v1535, %v1613
    %v1615 = vpop.f32.mrf.mxu0
    %1616 = vdwg.mxu0
    %v1617 = vadd.f32 %v1609, %v65
    %v1618 = vadd.f32 %v1614, %v66
    %v1619 = vsel %vm78, %v1617, 0.0
    %1620 = vadd.xlane.f32.xlu0 %v1619
    %v1621 = vpop.xlane.xlu0 %1620
    %v1622 = vsel %vm78, %v1618, 0.0
    %1623 = vadd.xlane.f32.xlu0 %v1622
    %v1624 = vpop.xlane.xlu0 %1623
    %v1625 = vrcp.pop 32.0
    %v1626 = vmul.f32 %v1621, %v1625
    %v1627 = vmul.f32 %v1624, %v1625
    %v1628 = vsub.f32 %v1617, %v1626
    %v1629 = vsub.f32 %v1618, %v1627
    %v1630 = vmul.f32 %v1628, %v1628
    %v1631 = vmul.f32 %v1629, %v1629
    %v1632 = vsel %vm78, %v1630, 0.0
    %1633 = vadd.xlane.f32.xlu0 %v1632
    %v1634 = vpop.xlane.xlu0 %1633
    %v1635 = vsel %vm78, %v1631, 0.0
    %1636 = vadd.xlane.f32.xlu0 %v1635
    %v1637 = vpop.xlane.xlu0 %1636
    %v1638 = vmul.f32 %v1634, %v1625
    %v1639 = vmul.f32 %v1637, %v1625
    %v1640 = vadd.f32 %v1638, 1e-12
    %v1641 = vadd.f32 %v1639, 1e-12
    %v1642 = vrsqrt.pop %v1640
    %v1643 = vrsqrt.pop %v1641
    %v1644 = vmul.f32 %v1628, %v1642
    %v1645 = vmul.f32 %v1629, %v1643
    %v1646 = vlaneseq
    %v1647 = vshrl.u32 %v1646, 7
    %v1648 = vsub.s32 0, %v1647
    %v1649 = vrot.slane %v1530, %v1648
    %v1650 = vmul.f32 %v1644, %v1649
    %v1651 = vmul.f32 %v1645, %v1649
    %v1652 = vlaneseq
    %v1653 = vshrl.u32 %v1652, 7
    %v1654 = vsub.s32 0, %v1653
    %v1655 = vrot.slane %v1531, %v1654
    %v1656 = vadd.f32 %v1650, %v1655
    %v1657 = vadd.f32 %v1651, %v1655
    %1658 = vst.msk [vmem:[#allocation8] sm:$0xff] %vm78, %v1656
    %1659 = vst.msk [vmem:[#allocation8 + $0x8] sm:$0xff] %vm78, %v1657
    // Predicated region
    $region38: #{bert_attention.1} parent=1 // pred_check
      _
    $region39: #{bert_attention.1} parent=1 // pred_check_branch
      %1661 = sbr.rel (0) target = $region41
    $region40: #{bert_attention.1} parent=1 // pred_region
      %s1663 = ssub.s32 256, 256
      %1664 = vsyncadd [#allocation4], %s1663
      %s1665 = sshll.u32 [#allocation8], 4
      %s1666 = int_to_ptr.vmem [resolvable:$true] %s1665
      %1671 = dma.vmem_to_hbm [thread:$0]  %s1666, 256, %s6, [#allocation4], 128, 128, 8
    $region41: #{bert_attention.1} parent=1 // pred_fallthru
      _
    // Predicated region
    $region42: #{bert_attention.1} parent=1 // pred_check
      _
    $region43: #{bert_attention.1} parent=1 // pred_check_branch
      %1673 = sbr.rel (0) target = $region45
    $region44: #{bert_attention.1} parent=1 // pred_region
      %1674 = dma.done [#allocation4], 256
    $region45: #{bert_attention.1} parent=1 // pred_fallthru
      _
    %1675 = vsyncpa [#allocation3], 1
    %1676 = vsyncpa [#allocation6], 1
    %1677 = vsyncpa [#allocation4], 1

</llo_original>
